<compile_context>
chip_gen: v7x
topology: tpu7x:2x2x1
jax: 0.10.0
libtpu: 0.0.40
codegen_flags: <defaults>
</compile_context>

<pallas_src>
import math
import functools

import jax
import jax.numpy as jnp
from jax.experimental import pallas as pl
from jax.experimental.pallas import tpu as pltpu

LN_EPS = 1e-5  # PyTorch nn.LayerNorm default


# ---------------------------------------------------------------------------
# small in-kernel math helpers
# ---------------------------------------------------------------------------
def _erf(x):
    # Abramowitz & Stegun 7.1.26 (|err| < 1.5e-7) built from Mosaic-friendly ops.
    a1, a2, a3, a4, a5 = 0.254829592, -0.284496736, 1.421413741, -1.453152027, 1.061405429
    p = 0.3275911
    ax = jnp.abs(x)
    # EUP approximate reciprocal instead of a VALU-refined divide.
    t = pl.reciprocal(1.0 + p * ax, approx=True)
    poly = ((((a5 * t + a4) * t + a3) * t + a2) * t + a1) * t
    y = 1.0 - poly * jnp.exp(-ax * ax)
    return jnp.where(x >= 0, y, -y)


def _gelu_exact(x):
    # nn.GELU default (erf formulation)
    return 0.5 * x * (1.0 + _erf(x * (1.0 / math.sqrt(2.0))))


def _layernorm(x, w, b):
    mu = jnp.mean(x, axis=-1, keepdims=True)
    xc = x - mu
    var = jnp.mean(xc * xc, axis=-1, keepdims=True)
    return xc * jax.lax.rsqrt(var + LN_EPS) * w + b


# ---------------------------------------------------------------------------
# Kernel 1: fused norm1 + multi-head attention + proj + residual
#           + fused CE mean-reduction over the template-row stripe.
# ---------------------------------------------------------------------------
def _attn_kernel(x_ref, ln_w_ref, ln_b_ref, wqkv_ref, wproj_ref, bproj_ref,
                 xo_ref, attn_ref, ce_ref, o_scratch,
                 *, num_heads, head_dim, lens_t):
    x = x_ref[0]                                   # (N, C) f32
    N, C = x.shape
    lens_s = N - lens_t
    scale = head_dim ** -0.5

    xn = _layernorm(x, ln_w_ref[0], ln_b_ref[0])
    qkv = jnp.dot(xn.astype(jnp.bfloat16), wqkv_ref[...],
                  preferred_element_type=jnp.float32)          # (N, 3C) f32 acc

    ce_acc = jnp.zeros((1, lens_s), jnp.float32)
    for h in range(num_heads):                     # static unroll over heads
        # TODO(synk): head_dim slices are not 128-lane aligned in general; a
        # head-paired / batched-dot_general layout would avoid per-head relayouts.
        qh = qkv[:, h * head_dim:(h + 1) * head_dim].astype(jnp.bfloat16)
        kh = qkv[:, C + h * head_dim:C + (h + 1) * head_dim].astype(jnp.bfloat16)
        vh = qkv[:, 2 * C + h * head_dim:2 * C + (h + 1) * head_dim].astype(jnp.bfloat16)

        s = jnp.dot(qh, kh.T, preferred_element_type=jnp.float32) * scale
        s = s - jnp.max(s, axis=-1, keepdims=True)
        e = jnp.exp(s)
        p = e * pl.reciprocal(jnp.sum(e, axis=-1, keepdims=True), approx=True)

        # bf16 attention-prob writeback (halves HBM write bandwidth).
        attn_ref[0, h, :, :] = p.astype(jnp.bfloat16)
        # fused CE reduction: sum over template rows of the search-column stripe.
        ce_acc = ce_acc + jnp.sum(p[:lens_t, lens_t:], axis=0, keepdims=True)
        # head output goes into a VMEM scratch slab (no concat / no long live ranges).
        o_scratch[:, h * head_dim:(h + 1) * head_dim] = jnp.dot(
            p.astype(jnp.bfloat16), vh,
            preferred_element_type=jnp.float32).astype(jnp.bfloat16)

    ce_ref[0] = ce_acc * (1.0 / float(num_heads * lens_t))

    o = jnp.dot(o_scratch[...], wproj_ref[...],
                preferred_element_type=jnp.float32) + bproj_ref[0]
    xo_ref[0] = x + o                              # residual (drop_path = identity)


def attention_block(x, ln_w, ln_b, wqkv, wproj, bproj, num_heads, lens_t):
    B, N, C = x.shape
    head_dim = C // num_heads
    lens_s = N - lens_t
    kernel = functools.partial(_attn_kernel, num_heads=num_heads,
                               head_dim=head_dim, lens_t=lens_t)
    xo, attn, ce = pl.pallas_call(
        kernel,
        out_shape=(jax.ShapeDtypeStruct((B, N, C), jnp.float32),
                   jax.ShapeDtypeStruct((B, num_heads, N, N), jnp.bfloat16),
                   jax.ShapeDtypeStruct((B, 1, lens_s), jnp.float32)),
        grid=(B,),
        in_specs=[pl.BlockSpec((1, N, C), lambda b: (b, 0, 0)),
                  pl.BlockSpec((1, C), lambda b: (0, 0)),
                  pl.BlockSpec((1, C), lambda b: (0, 0)),
                  # weights: constant block index (resident across grid steps)
                  pl.BlockSpec((C, 3 * C), lambda b: (0, 0)),
                  pl.BlockSpec((C, C), lambda b: (0, 0)),
                  pl.BlockSpec((1, C), lambda b: (0, 0))],
        out_specs=(pl.BlockSpec((1, N, C), lambda b: (b, 0, 0)),
                   pl.BlockSpec((1, num_heads, N, N), lambda b: (b, 0, 0, 0)),
                   pl.BlockSpec((1, 1, lens_s), lambda b: (b, 0, 0))),
        scratch_shapes=[pltpu.VMEM((N, C), jnp.bfloat16)],
        compiler_params=pltpu.CompilerParams(
            dimension_semantics=("parallel",)),       # batch iterations independent
    )(x, ln_w, ln_b, wqkv, wproj, bproj)
    return xo, attn, ce[:, 0, :]                       # ce: (B, lens_s)


# ---------------------------------------------------------------------------
# Kernel 2: fused norm2 + MLP (fc1 -> GELU -> fc2) + residual, tiled over rows.
# ---------------------------------------------------------------------------
def _mlp_kernel(x_ref, ln_w_ref, ln_b_ref, w1_ref, b1_ref, w2_ref, b2_ref, o_ref):
    x = x_ref[...]                                 # (tm, C) f32
    xn = _layernorm(x, ln_w_ref[0], ln_b_ref[0])
    h = jnp.dot(xn.astype(jnp.bfloat16), w1_ref[...],
                preferred_element_type=jnp.float32) + b1_ref[0]
    h = _gelu_exact(h)
    y = jnp.dot(h.astype(jnp.bfloat16), w2_ref[...],
                preferred_element_type=jnp.float32) + b2_ref[0]
    o_ref[...] = x + y                             # residual (drop_path = identity)


def _row_tile(num_rows):
    # biggest power-of-two tile (mult of 8) that evenly divides the row count
    for tm in (512, 256, 128, 64, 32, 16, 8):
        if num_rows % tm == 0:
            return tm
    return num_rows                                # fall back to a single full block


def mlp_block(x, ln_w, ln_b, w1, b1, w2, b2):
    B, N, C = x.shape
    Hd = w1.shape[1]
    R = B * N
    tm = _row_tile(R)
    xf = x.reshape(R, C)                           # MLP + LN are row-wise
    yf = pl.pallas_call(
        _mlp_kernel,
        out_shape=jax.ShapeDtypeStruct((R, C), jnp.float32),
        grid=(R // tm,),
        in_specs=[pl.BlockSpec((tm, C), lambda i: (i, 0)),
                  pl.BlockSpec((1, C), lambda i: (0, 0)),
                  pl.BlockSpec((1, C), lambda i: (0, 0)),
                  pl.BlockSpec((C, Hd), lambda i: (0, 0)),
                  pl.BlockSpec((1, Hd), lambda i: (0, 0)),
                  pl.BlockSpec((Hd, C), lambda i: (0, 0)),
                  pl.BlockSpec((1, C), lambda i: (0, 0))],
        out_specs=pl.BlockSpec((tm, C), lambda i: (i, 0)),
        compiler_params=pltpu.CompilerParams(dimension_semantics=("parallel",)),
    )(xf, ln_w, ln_b, w1, b1, w2, b2)
    return yf.reshape(B, N, C)


# ---------------------------------------------------------------------------
# candidate_elimination: CE mean comes fused from the attention kernel;
# sort / gather / concat glue stays in plain JAX (data-dependent selection).
# ---------------------------------------------------------------------------
def candidate_elimination(attn_mean, tokens, lens_t, keep_ratio, global_index, box_mask_z):
    lens_s = attn_mean.shape[-1]
    lens_keep = math.ceil(keep_ratio * lens_s)
    if lens_keep == lens_s:
        return tokens, global_index, None
    if box_mask_z is not None:
        # TODO(synk): box_mask_z masked-mean path (data-dependent boolean select) not implemented.
        raise NotImplementedError("box_mask_z path not implemented")

    order = jnp.argsort(-attn_mean, axis=1)        # descending; tie order may differ from torch.sort
    topk_idx = order[:, :lens_keep]
    non_topk_idx = order[:, lens_keep:]

    keep_index = jnp.take_along_axis(global_index, topk_idx, axis=1)
    removed_index = jnp.take_along_axis(global_index, non_topk_idx, axis=1)

    tokens_t = tokens[:, :lens_t]
    tokens_s = tokens[:, lens_t:]
    B, _, C = tokens_s.shape
    gather_idx = jnp.broadcast_to(topk_idx[:, :, None], (B, lens_keep, C))
    attentive_tokens = jnp.take_along_axis(tokens_s, gather_idx, axis=1)
    tokens_new = jnp.concatenate([tokens_t, attentive_tokens], axis=1)
    return tokens_new, keep_index, removed_index


# ---------------------------------------------------------------------------
# CEBlock
# ---------------------------------------------------------------------------
def init_ce_block_params(key, dim, num_heads, mlp_ratio=4.0):
    hidden = int(dim * mlp_ratio)
    ks = jax.random.split(key, 8)
    s = 0.02
    bf16 = jnp.bfloat16
    return dict(
        ln1_w=jnp.ones((1, dim), jnp.float32),
        ln1_b=jnp.zeros((1, dim), jnp.float32),
        # matmul weights stored in bf16 (MXU bf16 path; halves VMEM/HBM traffic)
        wqkv=(jax.random.normal(ks[0], (dim, 3 * dim), jnp.float32) * s).astype(bf16),  # qkv_bias=False
        wproj=(jax.random.normal(ks[1], (dim, dim), jnp.float32) * s).astype(bf16),
        bproj=jax.random.normal(ks[2], (1, dim), jnp.float32) * s,
        ln2_w=jnp.ones((1, dim), jnp.float32),
        ln2_b=jnp.zeros((1, dim), jnp.float32),
        w1=(jax.random.normal(ks[3], (dim, hidden), jnp.float32) * s).astype(bf16),
        b1=jax.random.normal(ks[4], (1, hidden), jnp.float32) * s,
        w2=(jax.random.normal(ks[5], (hidden, dim), jnp.float32) * s).astype(bf16),
        b2=jax.random.normal(ks[6], (1, dim), jnp.float32) * s,
    )


class CEBlockPallas:
    def __init__(self, dim, num_heads, mlp_ratio=4.0, keep_ratio_search=1.0, key=None):
        self.dim = dim
        self.num_heads = num_heads
        self.keep_ratio_search = keep_ratio_search
        self.params = init_ce_block_params(key, dim, num_heads, mlp_ratio)

    def __call__(self, x, global_index_template, global_index_search, mask=None,
                 ce_template_mask=None, keep_ratio_search=None):
        if mask is not None:
            # TODO(synk): attention mask (masked_fill with -inf) not implemented.
            raise NotImplementedError("attention mask not implemented")
        p = self.params
        lens_t = global_index_template.shape[1]

        x_new, attn, ce_mean = attention_block(
            x, p["ln1_w"], p["ln1_b"], p["wqkv"], p["wproj"], p["bproj"],
            self.num_heads, lens_t)
        x = x_new  # x + drop_path(attn_out); drop_path = identity

        removed_index_search = None
        if self.keep_ratio_search < 1 and (keep_ratio_search is None or keep_ratio_search < 1):
            kr = self.keep_ratio_search if keep_ratio_search is None else keep_ratio_search
            x, global_index_search, removed_index_search = candidate_elimination(
                ce_mean, x, lens_t, kr, global_index_search, ce_template_mask)

        x = mlp_block(x, p["ln2_w"], p["ln2_b"], p["w1"], p["b1"], p["w2"], p["b2"])
        return x, global_index_template, global_index_search, removed_index_search, attn


# ---------------------------------------------------------------------------
if __name__ == "__main__":
    B, lens_t, lens_s, C, H = 2, 4, 12, 32, 4
    N = lens_t + lens_s

    key = jax.random.PRNGKey(0)
    kx, kp = jax.random.split(key)

    x = jax.random.normal(kx, (B, N, C), jnp.float32)
    global_index_template = jnp.broadcast_to(
        jnp.arange(lens_t, dtype=jnp.int32)[None, :], (B, lens_t))
    global_index_search = jnp.broadcast_to(
        jnp.arange(lens_s, dtype=jnp.int32)[None, :], (B, lens_s))

    block = CEBlockPallas(dim=C, num_heads=H, mlp_ratio=4.0,
                          keep_ratio_search=0.7, key=kp)

    x_out, gi_t, gi_s, removed, attn = block(x, global_index_template, global_index_search)

    jax.block_until_ready(x_out)
    jax.block_until_ready(attn)

    lens_keep = math.ceil(0.7 * lens_s)
    assert x_out.shape == (B, lens_t + lens_keep, C)
    assert attn.shape == (B, H, N, N)
    assert gi_s.shape == (B, lens_keep)
    assert removed.shape == (B, lens_s - lens_keep)
    # sanity: softmax rows of the (bf16-stored) attention probabilities sum to ~1
    row_sums = jnp.sum(attn.astype(jnp.float32), axis=-1)
    assert bool(jnp.all(jnp.abs(row_sums - 1.0) < 3e-2))

    print("KERNEL_OK")
</pallas_src>

<mosaic_0001>
module attributes {stable_mosaic.version = 11 : i64} {
  func.func @_attn_kernel(%arg0: i32, %arg1: memref<1x16x32xf32, #tpu.memory_space<vmem>>, %arg2: memref<1x32xf32, #tpu.memory_space<vmem>>, %arg3: memref<1x32xf32, #tpu.memory_space<vmem>>, %arg4: memref<32x96xbf16, #tpu.memory_space<vmem>>, %arg5: memref<32x32xbf16, #tpu.memory_space<vmem>>, %arg6: memref<1x32xf32, #tpu.memory_space<vmem>>, %arg7: memref<1x16x32xf32, #tpu.memory_space<vmem>>, %arg8: memref<1x4x16x16xbf16, #tpu.memory_space<vmem>>, %arg9: memref<1x1x12xf32, #tpu.memory_space<vmem>>, %arg10: memref<16x32xbf16, #tpu.memory_space<vmem>>) attributes {dimension_semantics = [#tpu.dimension_semantics<parallel>], iteration_bounds = array<i64: 2>, scalar_prefetch = 0 : i64, scratch_operands = 1 : i64, tpu.core_type = #tpu.core_type<tc>, window_params = [{transform_indices = @transform_0, window_bounds = array<i64: 1, 16, 32>}, {pipeline_mode = #tpu.pipeline_mode<synchronous>, transform_indices = @transform_1, window_bounds = array<i64: 1, 32>}, {pipeline_mode = #tpu.pipeline_mode<synchronous>, transform_indices = @transform_2, window_bounds = array<i64: 1, 32>}, {pipeline_mode = #tpu.pipeline_mode<synchronous>, transform_indices = @transform_3, window_bounds = array<i64: 32, 96>}, {pipeline_mode = #tpu.pipeline_mode<synchronous>, transform_indices = @transform_4, window_bounds = array<i64: 32, 32>}, {pipeline_mode = #tpu.pipeline_mode<synchronous>, transform_indices = @transform_5, window_bounds = array<i64: 1, 32>}, {transform_indices = @transform_6, window_bounds = array<i64: 1, 16, 32>}, {transform_indices = @transform_7, window_bounds = array<i64: 1, 4, 16, 16>}, {transform_indices = @transform_8, window_bounds = array<i64: 1, 1, 12>}]} {
    %c0 = arith.constant 0 : index
    %c0_0 = arith.constant 0 : index
    %c0_1 = arith.constant 0 : index
    %0 = vector.load %arg1[%c0, %c0_0, %c0_1] : memref<1x16x32xf32, #tpu.memory_space<vmem>>, vector<1x16x32xf32>
    %1 = vector.shape_cast %0 : vector<1x16x32xf32> to vector<16x32xf32>
    %c0_2 = arith.constant 0 : index
    %c0_3 = arith.constant 0 : index
    %2 = vector.load %arg2[%c0_2, %c0_3] : memref<1x32xf32, #tpu.memory_space<vmem>>, vector<1x32xf32>
    %3 = vector.shape_cast %2 : vector<1x32xf32> to vector<32xf32>
    %c0_4 = arith.constant 0 : index
    %c0_5 = arith.constant 0 : index
    %4 = vector.load %arg3[%c0_4, %c0_5] : memref<1x32xf32, #tpu.memory_space<vmem>>, vector<1x32xf32>
    %5 = vector.shape_cast %4 : vector<1x32xf32> to vector<32xf32>
    %cst = arith.constant dense<0.000000e+00> : vector<16xf32>
    %6 = vector.multi_reduction <add>, %1, %cst [1] : vector<16x32xf32> to vector<16xf32>
    %7 = vector.shape_cast %6 : vector<16xf32> to vector<16x1xf32>
    %cst_6 = arith.constant 3.200000e+01 : f32
    %8 = vector.broadcast %cst_6 : f32 to vector<16x1xf32>
    %9 = arith.divf %7, %8 : vector<16x1xf32>
    %10 = vector.broadcast %9 : vector<16x1xf32> to vector<16x32xf32>
    %11 = arith.subf %1, %10 : vector<16x32xf32>
    %12 = arith.mulf %11, %11 : vector<16x32xf32>
    %cst_7 = arith.constant dense<0.000000e+00> : vector<16xf32>
    %13 = vector.multi_reduction <add>, %12, %cst_7 [1] : vector<16x32xf32> to vector<16xf32>
    %14 = vector.shape_cast %13 : vector<16xf32> to vector<16x1xf32>
    %cst_8 = arith.constant 3.200000e+01 : f32
    %15 = vector.broadcast %cst_8 : f32 to vector<16x1xf32>
    %16 = arith.divf %14, %15 : vector<16x1xf32>
    %cst_9 = arith.constant 9.99999974E-6 : f32
    %17 = vector.broadcast %cst_9 : f32 to vector<16x1xf32>
    %18 = arith.addf %16, %17 : vector<16x1xf32>
    %19 = math.rsqrt %18 : vector<16x1xf32>
    %20 = vector.broadcast %19 : vector<16x1xf32> to vector<16x32xf32>
    %21 = arith.mulf %11, %20 : vector<16x32xf32>
    %22 = vector.shape_cast %3 : vector<32xf32> to vector<1x32xf32>
    %23 = vector.broadcast %22 : vector<1x32xf32> to vector<16x32xf32>
    %24 = arith.mulf %21, %23 : vector<16x32xf32>
    %25 = vector.shape_cast %5 : vector<32xf32> to vector<1x32xf32>
    %26 = vector.broadcast %25 : vector<1x32xf32> to vector<16x32xf32>
    %27 = arith.addf %24, %26 : vector<16x32xf32>
    %28 = arith.truncf %27 : vector<16x32xf32> to vector<16x32xbf16>
    %c0_10 = arith.constant 0 : index
    %c0_11 = arith.constant 0 : index
    %29 = vector.load %arg4[%c0_10, %c0_11] : memref<32x96xbf16, #tpu.memory_space<vmem>>, vector<32x96xbf16>
    %cst_12 = arith.constant dense<0.000000e+00> : vector<16x96xf32>
    %30 = tpu.matmul %28, %29, %cst_12 {dimension_numbers = #tpu.dot_dimension_numbers<[1], [0], [0], [1], [0, 0, 1, 1], [], []>} : vector<16x32xbf16>, vector<32x96xbf16>, vector<16x96xf32> -> vector<16x96xf32>
    %cst_13 = arith.constant 0.000000e+00 : f32
    %31 = vector.broadcast %cst_13 : f32 to vector<1x12xf32>
    %32 = vector.extract_strided_slice %30 {offsets = [0, 0], sizes = [16, 8], strides = [1, 1]} : vector<16x96xf32> to vector<16x8xf32>
    %33 = arith.truncf %32 : vector<16x8xf32> to vector<16x8xbf16>
    %34 = vector.extract_strided_slice %30 {offsets = [0, 32], sizes = [16, 8], strides = [1, 1]} : vector<16x96xf32> to vector<16x8xf32>
    %35 = arith.truncf %34 : vector<16x8xf32> to vector<16x8xbf16>
    %36 = vector.extract_strided_slice %30 {offsets = [0, 64], sizes = [16, 8], strides = [1, 1]} : vector<16x96xf32> to vector<16x8xf32>
    %37 = arith.truncf %36 : vector<16x8xf32> to vector<16x8xbf16>
    %38 = tpu.transpose %35, [1, 0] : vector<16x8xbf16> -> vector<8x16xbf16>
    %cst_14 = arith.constant dense<0.000000e+00> : vector<16x16xf32>
    %39 = tpu.matmul %33, %38, %cst_14 {dimension_numbers = #tpu.dot_dimension_numbers<[1], [0], [0], [1], [0, 0, 1, 1], [], []>} : vector<16x8xbf16>, vector<8x16xbf16>, vector<16x16xf32> -> vector<16x16xf32>
    %cst_15 = arith.constant 0.353553385 : f32
    %40 = vector.broadcast %cst_15 : f32 to vector<16x16xf32>
    %41 = arith.mulf %39, %40 : vector<16x16xf32>
    %cst_16 = arith.constant dense<0xFF800000> : vector<16xf32>
    %42 = vector.multi_reduction <maximumf>, %41, %cst_16 [1] : vector<16x16xf32> to vector<16xf32>
    %43 = vector.shape_cast %42 : vector<16xf32> to vector<16x1xf32>
    %44 = vector.broadcast %43 : vector<16x1xf32> to vector<16x16xf32>
    %45 = arith.subf %41, %44 : vector<16x16xf32>
    %46 = math.exp %45 : vector<16x16xf32>
    %cst_17 = arith.constant dense<0.000000e+00> : vector<16xf32>
    %47 = vector.multi_reduction <add>, %46, %cst_17 [1] : vector<16x16xf32> to vector<16xf32>
    %48 = vector.shape_cast %47 : vector<16xf32> to vector<16x1xf32>
    %49 = tpu.reciprocal %48 {approx = true} : vector<16x1xf32> -> vector<16x1xf32>
    %50 = vector.broadcast %49 : vector<16x1xf32> to vector<16x16xf32>
    %51 = arith.mulf %46, %50 : vector<16x16xf32>
    %52 = arith.truncf %51 : vector<16x16xf32> to vector<16x16xbf16>
    %c0_18 = arith.constant 0 : index
    %c0_19 = arith.constant 0 : index
    %c0_20 = arith.constant 0 : index
    %c0_21 = arith.constant 0 : index
    %53 = vector.load %arg8[%c0_18, %c0_19, %c0_20, %c0_21] : memref<1x4x16x16xbf16, #tpu.memory_space<vmem>>, vector<1x1x16x16xbf16>
    %54 = vector.shape_cast %53 : vector<1x1x16x16xbf16> to vector<16x16xbf16>
    %55 = vector.shape_cast %52 : vector<16x16xbf16> to vector<1x1x16x16xbf16>
    tpu.vector_store %arg8[%c0_18, %c0_19, %c0_20, %c0_21], %55 {strides = array<i32>} : memref<1x4x16x16xbf16, #tpu.memory_space<vmem>>, vector<1x1x16x16xbf16>,
    %56 = vector.extract_strided_slice %51 {offsets = [0, 4], sizes = [4, 12], strides = [1, 1]} : vector<16x16xf32> to vector<4x12xf32>
    %cst_22 = arith.constant dense<0.000000e+00> : vector<12xf32>
    %57 = vector.multi_reduction <add>, %56, %cst_22 [0] : vector<4x12xf32> to vector<12xf32>
    %58 = vector.shape_cast %57 : vector<12xf32> to vector<1x12xf32>
    %59 = arith.addf %31, %58 : vector<1x12xf32>
    %60 = arith.truncf %51 : vector<16x16xf32> to vector<16x16xbf16>
    %cst_23 = arith.constant dense<0.000000e+00> : vector<16x8xf32>
    %61 = tpu.matmul %60, %37, %cst_23 {dimension_numbers = #tpu.dot_dimension_numbers<[1], [0], [0], [1], [0, 0, 1, 1], [], []>} : vector<16x16xbf16>, vector<16x8xbf16>, vector<16x8xf32> -> vector<16x8xf32>
    %62 = arith.truncf %61 : vector<16x8xf32> to vector<16x8xbf16>
    %c0_24 = arith.constant 0 : index
    %c0_25 = arith.constant 0 : index
    %63 = vector.load %arg10[%c0_24, %c0_25] : memref<16x32xbf16, #tpu.memory_space<vmem>>, vector<16x8xbf16>
    tpu.vector_store %arg10[%c0_24, %c0_25], %62 {strides = array<i32>} : memref<16x32xbf16, #tpu.memory_space<vmem>>, vector<16x8xbf16>,
    %64 = vector.extract_strided_slice %30 {offsets = [0, 8], sizes = [16, 8], strides = [1, 1]} : vector<16x96xf32> to vector<16x8xf32>
    %65 = arith.truncf %64 : vector<16x8xf32> to vector<16x8xbf16>
    %66 = vector.extract_strided_slice %30 {offsets = [0, 40], sizes = [16, 8], strides = [1, 1]} : vector<16x96xf32> to vector<16x8xf32>
    %67 = arith.truncf %66 : vector<16x8xf32> to vector<16x8xbf16>
    %68 = vector.extract_strided_slice %30 {offsets = [0, 72], sizes = [16, 8], strides = [1, 1]} : vector<16x96xf32> to vector<16x8xf32>
    %69 = arith.truncf %68 : vector<16x8xf32> to vector<16x8xbf16>
    %70 = tpu.transpose %67, [1, 0] : vector<16x8xbf16> -> vector<8x16xbf16>
    %cst_26 = arith.constant dense<0.000000e+00> : vector<16x16xf32>
    %71 = tpu.matmul %65, %70, %cst_26 {dimension_numbers = #tpu.dot_dimension_numbers<[1], [0], [0], [1], [0, 0, 1, 1], [], []>} : vector<16x8xbf16>, vector<8x16xbf16>, vector<16x16xf32> -> vector<16x16xf32>
    %cst_27 = arith.constant 0.353553385 : f32
    %72 = vector.broadcast %cst_27 : f32 to vector<16x16xf32>
    %73 = arith.mulf %71, %72 : vector<16x16xf32>
    %cst_28 = arith.constant dense<0xFF800000> : vector<16xf32>
    %74 = vector.multi_reduction <maximumf>, %73, %cst_28 [1] : vector<16x16xf32> to vector<16xf32>
    %75 = vector.shape_cast %74 : vector<16xf32> to vector<16x1xf32>
    %76 = vector.broadcast %75 : vector<16x1xf32> to vector<16x16xf32>
    %77 = arith.subf %73, %76 : vector<16x16xf32>
    %78 = math.exp %77 : vector<16x16xf32>
    %cst_29 = arith.constant dense<0.000000e+00> : vector<16xf32>
    %79 = vector.multi_reduction <add>, %78, %cst_29 [1] : vector<16x16xf32> to vector<16xf32>
    %80 = vector.shape_cast %79 : vector<16xf32> to vector<16x1xf32>
    %81 = tpu.reciprocal %80 {approx = true} : vector<16x1xf32> -> vector<16x1xf32>
    %82 = vector.broadcast %81 : vector<16x1xf32> to vector<16x16xf32>
    %83 = arith.mulf %78, %82 : vector<16x16xf32>
    %84 = arith.truncf %83 : vector<16x16xf32> to vector<16x16xbf16>
    %c0_30 = arith.constant 0 : index
    %c1 = arith.constant 1 : index
    %c0_31 = arith.constant 0 : index
    %c0_32 = arith.constant 0 : index
    %85 = vector.load %arg8[%c0_30, %c1, %c0_31, %c0_32] : memref<1x4x16x16xbf16, #tpu.memory_space<vmem>>, vector<1x1x16x16xbf16>
    %86 = vector.shape_cast %85 : vector<1x1x16x16xbf16> to vector<16x16xbf16>
    %87 = vector.shape_cast %84 : vector<16x16xbf16> to vector<1x1x16x16xbf16>
    tpu.vector_store %arg8[%c0_30, %c1, %c0_31, %c0_32], %87 {strides = array<i32>} : memref<1x4x16x16xbf16, #tpu.memory_space<vmem>>, vector<1x1x16x16xbf16>,
    %88 = vector.extract_strided_slice %83 {offsets = [0, 4], sizes = [4, 12], strides = [1, 1]} : vector<16x16xf32> to vector<4x12xf32>
    %cst_33 = arith.constant dense<0.000000e+00> : vector<12xf32>
    %89 = vector.multi_reduction <add>, %88, %cst_33 [0] : vector<4x12xf32> to vector<12xf32>
    %90 = vector.shape_cast %89 : vector<12xf32> to vector<1x12xf32>
    %91 = arith.addf %59, %90 : vector<1x12xf32>
    %92 = arith.truncf %83 : vector<16x16xf32> to vector<16x16xbf16>
    %cst_34 = arith.constant dense<0.000000e+00> : vector<16x8xf32>
    %93 = tpu.matmul %92, %69, %cst_34 {dimension_numbers = #tpu.dot_dimension_numbers<[1], [0], [0], [1], [0, 0, 1, 1], [], []>} : vector<16x16xbf16>, vector<16x8xbf16>, vector<16x8xf32> -> vector<16x8xf32>
    %94 = arith.truncf %93 : vector<16x8xf32> to vector<16x8xbf16>
    %c0_35 = arith.constant 0 : index
    %c8 = arith.constant 8 : index
    %95 = vector.load %arg10[%c0_35, %c8] : memref<16x32xbf16, #tpu.memory_space<vmem>>, vector<16x8xbf16>
    tpu.vector_store %arg10[%c0_35, %c8], %94 {strides = array<i32>} : memref<16x32xbf16, #tpu.memory_space<vmem>>, vector<16x8xbf16>,
    %96 = vector.extract_strided_slice %30 {offsets = [0, 16], sizes = [16, 8], strides = [1, 1]} : vector<16x96xf32> to vector<16x8xf32>
    %97 = arith.truncf %96 : vector<16x8xf32> to vector<16x8xbf16>
    %98 = vector.extract_strided_slice %30 {offsets = [0, 48], sizes = [16, 8], strides = [1, 1]} : vector<16x96xf32> to vector<16x8xf32>
    %99 = arith.truncf %98 : vector<16x8xf32> to vector<16x8xbf16>
    %100 = vector.extract_strided_slice %30 {offsets = [0, 80], sizes = [16, 8], strides = [1, 1]} : vector<16x96xf32> to vector<16x8xf32>
    %101 = arith.truncf %100 : vector<16x8xf32> to vector<16x8xbf16>
    %102 = tpu.transpose %99, [1, 0] : vector<16x8xbf16> -> vector<8x16xbf16>
    %cst_36 = arith.constant dense<0.000000e+00> : vector<16x16xf32>
    %103 = tpu.matmul %97, %102, %cst_36 {dimension_numbers = #tpu.dot_dimension_numbers<[1], [0], [0], [1], [0, 0, 1, 1], [], []>} : vector<16x8xbf16>, vector<8x16xbf16>, vector<16x16xf32> -> vector<16x16xf32>
    %cst_37 = arith.constant 0.353553385 : f32
    %104 = vector.broadcast %cst_37 : f32 to vector<16x16xf32>
    %105 = arith.mulf %103, %104 : vector<16x16xf32>
    %cst_38 = arith.constant dense<0xFF800000> : vector<16xf32>
    %106 = vector.multi_reduction <maximumf>, %105, %cst_38 [1] : vector<16x16xf32> to vector<16xf32>
    %107 = vector.shape_cast %106 : vector<16xf32> to vector<16x1xf32>
    %108 = vector.broadcast %107 : vector<16x1xf32> to vector<16x16xf32>
    %109 = arith.subf %105, %108 : vector<16x16xf32>
    %110 = math.exp %109 : vector<16x16xf32>
    %cst_39 = arith.constant dense<0.000000e+00> : vector<16xf32>
    %111 = vector.multi_reduction <add>, %110, %cst_39 [1] : vector<16x16xf32> to vector<16xf32>
    %112 = vector.shape_cast %111 : vector<16xf32> to vector<16x1xf32>
    %113 = tpu.reciprocal %112 {approx = true} : vector<16x1xf32> -> vector<16x1xf32>
    %114 = vector.broadcast %113 : vector<16x1xf32> to vector<16x16xf32>
    %115 = arith.mulf %110, %114 : vector<16x16xf32>
    %116 = arith.truncf %115 : vector<16x16xf32> to vector<16x16xbf16>
    %c0_40 = arith.constant 0 : index
    %c2 = arith.constant 2 : index
    %c0_41 = arith.constant 0 : index
    %c0_42 = arith.constant 0 : index
    %117 = vector.load %arg8[%c0_40, %c2, %c0_41, %c0_42] : memref<1x4x16x16xbf16, #tpu.memory_space<vmem>>, vector<1x1x16x16xbf16>
    %118 = vector.shape_cast %117 : vector<1x1x16x16xbf16> to vector<16x16xbf16>
    %119 = vector.shape_cast %116 : vector<16x16xbf16> to vector<1x1x16x16xbf16>
    tpu.vector_store %arg8[%c0_40, %c2, %c0_41, %c0_42], %119 {strides = array<i32>} : memref<1x4x16x16xbf16, #tpu.memory_space<vmem>>, vector<1x1x16x16xbf16>,
    %120 = vector.extract_strided_slice %115 {offsets = [0, 4], sizes = [4, 12], strides = [1, 1]} : vector<16x16xf32> to vector<4x12xf32>
    %cst_43 = arith.constant dense<0.000000e+00> : vector<12xf32>
    %121 = vector.multi_reduction <add>, %120, %cst_43 [0] : vector<4x12xf32> to vector<12xf32>
    %122 = vector.shape_cast %121 : vector<12xf32> to vector<1x12xf32>
    %123 = arith.addf %91, %122 : vector<1x12xf32>
    %124 = arith.truncf %115 : vector<16x16xf32> to vector<16x16xbf16>
    %cst_44 = arith.constant dense<0.000000e+00> : vector<16x8xf32>
    %125 = tpu.matmul %124, %101, %cst_44 {dimension_numbers = #tpu.dot_dimension_numbers<[1], [0], [0], [1], [0, 0, 1, 1], [], []>} : vector<16x16xbf16>, vector<16x8xbf16>, vector<16x8xf32> -> vector<16x8xf32>
    %126 = arith.truncf %125 : vector<16x8xf32> to vector<16x8xbf16>
    %c0_45 = arith.constant 0 : index
    %c16 = arith.constant 16 : index
    %127 = vector.load %arg10[%c0_45, %c16] : memref<16x32xbf16, #tpu.memory_space<vmem>>, vector<16x8xbf16>
    tpu.vector_store %arg10[%c0_45, %c16], %126 {strides = array<i32>} : memref<16x32xbf16, #tpu.memory_space<vmem>>, vector<16x8xbf16>,
    %128 = vector.extract_strided_slice %30 {offsets = [0, 24], sizes = [16, 8], strides = [1, 1]} : vector<16x96xf32> to vector<16x8xf32>
    %129 = arith.truncf %128 : vector<16x8xf32> to vector<16x8xbf16>
    %130 = vector.extract_strided_slice %30 {offsets = [0, 56], sizes = [16, 8], strides = [1, 1]} : vector<16x96xf32> to vector<16x8xf32>
    %131 = arith.truncf %130 : vector<16x8xf32> to vector<16x8xbf16>
    %132 = vector.extract_strided_slice %30 {offsets = [0, 88], sizes = [16, 8], strides = [1, 1]} : vector<16x96xf32> to vector<16x8xf32>
    %133 = arith.truncf %132 : vector<16x8xf32> to vector<16x8xbf16>
    %134 = tpu.transpose %131, [1, 0] : vector<16x8xbf16> -> vector<8x16xbf16>
    %cst_46 = arith.constant dense<0.000000e+00> : vector<16x16xf32>
    %135 = tpu.matmul %129, %134, %cst_46 {dimension_numbers = #tpu.dot_dimension_numbers<[1], [0], [0], [1], [0, 0, 1, 1], [], []>} : vector<16x8xbf16>, vector<8x16xbf16>, vector<16x16xf32> -> vector<16x16xf32>
    %cst_47 = arith.constant 0.353553385 : f32
    %136 = vector.broadcast %cst_47 : f32 to vector<16x16xf32>
    %137 = arith.mulf %135, %136 : vector<16x16xf32>
    %cst_48 = arith.constant dense<0xFF800000> : vector<16xf32>
    %138 = vector.multi_reduction <maximumf>, %137, %cst_48 [1] : vector<16x16xf32> to vector<16xf32>
    %139 = vector.shape_cast %138 : vector<16xf32> to vector<16x1xf32>
    %140 = vector.broadcast %139 : vector<16x1xf32> to vector<16x16xf32>
    %141 = arith.subf %137, %140 : vector<16x16xf32>
    %142 = math.exp %141 : vector<16x16xf32>
    %cst_49 = arith.constant dense<0.000000e+00> : vector<16xf32>
    %143 = vector.multi_reduction <add>, %142, %cst_49 [1] : vector<16x16xf32> to vector<16xf32>
    %144 = vector.shape_cast %143 : vector<16xf32> to vector<16x1xf32>
    %145 = tpu.reciprocal %144 {approx = true} : vector<16x1xf32> -> vector<16x1xf32>
    %146 = vector.broadcast %145 : vector<16x1xf32> to vector<16x16xf32>
    %147 = arith.mulf %142, %146 : vector<16x16xf32>
    %148 = arith.truncf %147 : vector<16x16xf32> to vector<16x16xbf16>
    %c0_50 = arith.constant 0 : index
    %c3 = arith.constant 3 : index
    %c0_51 = arith.constant 0 : index
    %c0_52 = arith.constant 0 : index
    %149 = vector.load %arg8[%c0_50, %c3, %c0_51, %c0_52] : memref<1x4x16x16xbf16, #tpu.memory_space<vmem>>, vector<1x1x16x16xbf16>
    %150 = vector.shape_cast %149 : vector<1x1x16x16xbf16> to vector<16x16xbf16>
    %151 = vector.shape_cast %148 : vector<16x16xbf16> to vector<1x1x16x16xbf16>
    tpu.vector_store %arg8[%c0_50, %c3, %c0_51, %c0_52], %151 {strides = array<i32>} : memref<1x4x16x16xbf16, #tpu.memory_space<vmem>>, vector<1x1x16x16xbf16>,
    %152 = vector.extract_strided_slice %147 {offsets = [0, 4], sizes = [4, 12], strides = [1, 1]} : vector<16x16xf32> to vector<4x12xf32>
    %cst_53 = arith.constant dense<0.000000e+00> : vector<12xf32>
    %153 = vector.multi_reduction <add>, %152, %cst_53 [0] : vector<4x12xf32> to vector<12xf32>
    %154 = vector.shape_cast %153 : vector<12xf32> to vector<1x12xf32>
    %155 = arith.addf %123, %154 : vector<1x12xf32>
    %156 = arith.truncf %147 : vector<16x16xf32> to vector<16x16xbf16>
    %cst_54 = arith.constant dense<0.000000e+00> : vector<16x8xf32>
    %157 = tpu.matmul %156, %133, %cst_54 {dimension_numbers = #tpu.dot_dimension_numbers<[1], [0], [0], [1], [0, 0, 1, 1], [], []>} : vector<16x16xbf16>, vector<16x8xbf16>, vector<16x8xf32> -> vector<16x8xf32>
    %158 = arith.truncf %157 : vector<16x8xf32> to vector<16x8xbf16>
    %c0_55 = arith.constant 0 : index
    %c24 = arith.constant 24 : index
    %159 = vector.load %arg10[%c0_55, %c24] : memref<16x32xbf16, #tpu.memory_space<vmem>>, vector<16x8xbf16>
    tpu.vector_store %arg10[%c0_55, %c24], %158 {strides = array<i32>} : memref<16x32xbf16, #tpu.memory_space<vmem>>, vector<16x8xbf16>,
    %cst_56 = arith.constant 6.250000e-02 : f32
    %160 = vector.broadcast %cst_56 : f32 to vector<1x12xf32>
    %161 = arith.mulf %155, %160 : vector<1x12xf32>
    %c0_57 = arith.constant 0 : index
    %c0_58 = arith.constant 0 : index
    %c0_59 = arith.constant 0 : index
    %162 = vector.load %arg9[%c0_57, %c0_58, %c0_59] : memref<1x1x12xf32, #tpu.memory_space<vmem>>, vector<1x1x12xf32>
    %163 = vector.shape_cast %162 : vector<1x1x12xf32> to vector<1x12xf32>
    %164 = vector.shape_cast %161 : vector<1x12xf32> to vector<1x1x12xf32>
    tpu.vector_store %arg9[%c0_57, %c0_58, %c0_59], %164 {strides = array<i32>} : memref<1x1x12xf32, #tpu.memory_space<vmem>>, vector<1x1x12xf32>,
    %c0_60 = arith.constant 0 : index
    %c0_61 = arith.constant 0 : index
    %165 = vector.load %arg10[%c0_60, %c0_61] : memref<16x32xbf16, #tpu.memory_space<vmem>>, vector<16x32xbf16>
    %c0_62 = arith.constant 0 : index
    %c0_63 = arith.constant 0 : index
    %166 = vector.load %arg5[%c0_62, %c0_63] : memref<32x32xbf16, #tpu.memory_space<vmem>>, vector<32x32xbf16>
    %cst_64 = arith.constant dense<0.000000e+00> : vector<16x32xf32>
    %167 = tpu.matmul %165, %166, %cst_64 {dimension_numbers = #tpu.dot_dimension_numbers<[1], [0], [0], [1], [0, 0, 1, 1], [], []>} : vector<16x32xbf16>, vector<32x32xbf16>, vector<16x32xf32> -> vector<16x32xf32>
    %c0_65 = arith.constant 0 : index
    %c0_66 = arith.constant 0 : index
    %168 = vector.load %arg6[%c0_65, %c0_66] : memref<1x32xf32, #tpu.memory_space<vmem>>, vector<1x32xf32>
    %169 = vector.shape_cast %168 : vector<1x32xf32> to vector<32xf32>
    %170 = vector.shape_cast %169 : vector<32xf32> to vector<1x32xf32>
    %171 = vector.broadcast %170 : vector<1x32xf32> to vector<16x32xf32>
    %172 = arith.addf %167, %171 : vector<16x32xf32>
    %173 = arith.addf %1, %172 : vector<16x32xf32>
    %c0_67 = arith.constant 0 : index
    %c0_68 = arith.constant 0 : index
    %c0_69 = arith.constant 0 : index
    %174 = vector.load %arg7[%c0_67, %c0_68, %c0_69] : memref<1x16x32xf32, #tpu.memory_space<vmem>>, vector<1x16x32xf32>
    %175 = vector.shape_cast %174 : vector<1x16x32xf32> to vector<16x32xf32>
    %176 = vector.shape_cast %173 : vector<16x32xf32> to vector<1x16x32xf32>
    tpu.vector_store %arg7[%c0_67, %c0_68, %c0_69], %176 {strides = array<i32>} : memref<1x16x32xf32, #tpu.memory_space<vmem>>, vector<1x16x32xf32>,
    return
  }
  func.func @transform_0(%arg0: i32) -> (i32, i32, i32) {
    %c0_i32 = arith.constant 0 : i32
    %c0_i32_0 = arith.constant 0 : i32
    %c0_i32_1 = arith.constant 0 : i32
    return %arg0, %c0_i32, %c0_i32_0 : i32, i32, i32
  }
  func.func @transform_1(%arg0: i32) -> (i32, i32) {
    %c0_i32 = arith.constant 0 : i32
    %c0_i32_0 = arith.constant 0 : i32
    %c0_i32_1 = arith.constant 0 : i32
    return %c0_i32, %c0_i32_0 : i32, i32
  }
  func.func @transform_2(%arg0: i32) -> (i32, i32) {
    %c0_i32 = arith.constant 0 : i32
    %c0_i32_0 = arith.constant 0 : i32
    %c0_i32_1 = arith.constant 0 : i32
    return %c0_i32, %c0_i32_0 : i32, i32
  }
  func.func @transform_3(%arg0: i32) -> (i32, i32) {
    %c0_i32 = arith.constant 0 : i32
    %c0_i32_0 = arith.constant 0 : i32
    %c0_i32_1 = arith.constant 0 : i32
    return %c0_i32, %c0_i32_0 : i32, i32
  }
  func.func @transform_4(%arg0: i32) -> (i32, i32) {
    %c0_i32 = arith.constant 0 : i32
    %c0_i32_0 = arith.constant 0 : i32
    %c0_i32_1 = arith.constant 0 : i32
    return %c0_i32, %c0_i32_0 : i32, i32
  }
  func.func @transform_5(%arg0: i32) -> (i32, i32) {
    %c0_i32 = arith.constant 0 : i32
    %c0_i32_0 = arith.constant 0 : i32
    %c0_i32_1 = arith.constant 0 : i32
    return %c0_i32, %c0_i32_0 : i32, i32
  }
  func.func @transform_6(%arg0: i32) -> (i32, i32, i32) {
    %c0_i32 = arith.constant 0 : i32
    %c0_i32_0 = arith.constant 0 : i32
    %c0_i32_1 = arith.constant 0 : i32
    return %arg0, %c0_i32, %c0_i32_0 : i32, i32, i32
  }
  func.func @transform_7(%arg0: i32) -> (i32, i32, i32, i32) {
    %c0_i32 = arith.constant 0 : i32
    %c0_i32_0 = arith.constant 0 : i32
    %c0_i32_1 = arith.constant 0 : i32
    %c0_i32_2 = arith.constant 0 : i32
    return %arg0, %c0_i32, %c0_i32_0, %c0_i32_1 : i32, i32, i32, i32
  }
  func.func @transform_8(%arg0: i32) -> (i32, i32, i32) {
    %c0_i32 = arith.constant 0 : i32
    %c0_i32_0 = arith.constant 0 : i32
    %c0_i32_1 = arith.constant 0 : i32
    return %arg0, %c0_i32, %c0_i32_0 : i32, i32, i32
  }
}

</mosaic_0001>

<llo_original>
// kernel: tpu_custom_call.1
$region0: #{tpu_custom_call.1}
  #allocation0 [shape = 'u32[]', space=smem, size = 0x4, offset = 0x4, fixed_abs, tag = 'smem constant byte address 0x4 - core index']
  #allocation1 [shape = 'u32[144,128]{1,0:T(1,128)}', space=vmem, size = 0x12000, scoped, tag = 'internal scratch']
  #allocation2 [shape = 'bf16[16,32]{1,0:T(16,128)(2,1)}', space=vmem, size = 0x1000, scoped, tag = 'scratch operand']
  %s0 = inlined_call_operand.hbm [shape: f32[2,16,32], index: 0, kind: input, shape index: {}]
  %s1 = inlined_call_operand.vmem [shape: f32[1,32], index: 1, kind: input, shape index: {}]
  %s2 = inlined_call_operand.vmem [shape: f32[1,32], index: 2, kind: input, shape index: {}]
  %s3 = inlined_call_operand.hbm [shape: bf16[32,96], index: 3, kind: input, shape index: {}]
  %s4 = inlined_call_operand.hbm [shape: bf16[32,32], index: 4, kind: input, shape index: {}]
  %s5 = inlined_call_operand.vmem [shape: f32[1,32], index: 5, kind: input, shape index: {}]
  %s6 = inlined_call_operand.hbm [shape: f32[2,16,32], index: 6, kind: output, shape index: {0}]
  %s7 = inlined_call_operand.hbm [shape: bf16[2,4,16,16], index: 7, kind: output, shape index: {1}]
  %s8 = inlined_call_operand.hbm [shape: f32[2,1,12], index: 8, kind: output, shape index: {2}]
  %9 = xla_tuple %s6, %s7, %s8
  %s10 = sld [smem:[#allocation0]]
  $region85: #{tpu_custom_call.1} parent=0
    _
  %s12 = ssub.s32 1, %s10
  %s13 = scalar_select 0, %s12, %s10
  $region1: #{tpu_custom_call.1} parent=0
    #allocation3 [shape = 'u8[16384]{0}', space=vmem, size = 0x4000, scoped, tag = 'input window, operand 0']
    #allocation4 [shape = 's32[2]{0}', space=sflag, size = 0x8, scoped, tag = 'scoped memory for tpu_custom_call.1']
    #allocation5 [shape = 's32[2]{0}', space=sflag, size = 0x8, scoped, tag = 'scoped memory for tpu_custom_call.1']
    #allocation6 [shape = 'u8[8192]{0}', space=vmem, size = 0x2000, scoped, tag = 'input window, operand 3, single buffered']
    #allocation7 [shape = 's32[1]{0}', space=sflag, size = 0x4, scoped, tag = 'scoped memory for tpu_custom_call.1']
    #allocation8 [shape = 'u8[8192]{0}', space=vmem, size = 0x2000, scoped, tag = 'input window, operand 4, single buffered']
    #allocation9 [shape = 'u8[16384]{0}', space=vmem, size = 0x4000, scoped, tag = 'output window, operand 0']
    #allocation10 [shape = 'u8[32768]{0}', space=vmem, size = 0x8000, scoped, tag = 'output window, operand 1']
    #allocation11 [shape = 's32[2]{0}', space=sflag, size = 0x8, scoped, tag = 'scoped memory for tpu_custom_call.1']
    #allocation12 [shape = 'u8[1024]{0}', space=vmem, size = 0x400, scoped, tag = 'output window, operand 2']
    %14 = vsyncpa [#allocation4], 0
    %s15 = scalar_lea.sflag [#allocation4], 1
    %16 = vsyncpa %s15, 0
    %17 = vsyncpa [#allocation7], 0
    %18 = vsyncpa [#allocation5], 0
    %s19 = scalar_lea.sflag [#allocation5], 1
    %20 = vsyncpa %s19, 0
    %21 = vsyncpa [#allocation11], 0
    %s22 = scalar_lea.sflag [#allocation11], 1
    %23 = vsyncpa %s22, 0
    loop: start=0, step=1, limit=4
    $region2: #{tpu_custom_call.1} parent=1 // loop_pre_header
      _
    $region3: #{tpu_custom_call.1} parent=1 // loop_header
      %s25 = sphi 0, %s29
      %p26 = scmp.ge.s32.totalorder %s25, 4
      %s35 = sphi 0, %s37
      %s38 = sphi 0, %s35
      %s39 = sphi 0, %s38
      %s55 = sphi 0, %s39
      %s59 = sphi 0, %s59
      %s61 = sphi 0, %s59
      %s62 = sphi 0, %s61
      %s76 = sphi 0, %s62
      %s80 = sphi 0, %s80
      %s82 = sphi 0, %s80
      %s83 = sphi 0, %s82
      %s97 = sphi 0, %s83
      %s101 = sphi 0, %s101
      %s103 = sphi 0, %s101
      %s104 = sphi 0, %s103
      %s118 = sphi 0, %s104
      %s122 = sphi 0, %s122
      %s124 = sphi 0, %s122
      %s125 = sphi 0, %s124
      %s139 = sphi 0, %s125
      %s143 = sphi 0, %s143
      %s145 = sphi 0, %s143
      %s146 = sphi 0, %s145
      %s160 = sphi 0, %s146
      %s166 = sphi 0, %s168
      %s169 = sphi 0, %s166
      %s170 = sphi 0, %s169
      %s186 = sphi 0, %s170
      %s192 = sphi 0, %s194
      %s195 = sphi 0, %s192
      %s196 = sphi 0, %s195
      %s212 = sphi 0, %s196
      %s218 = sphi 0, %s220
      %s221 = sphi 0, %s218
      %s222 = sphi 0, %s221
      %s238 = sphi 0, %s222
    $region4: #{tpu_custom_call.1} parent=1 // loop_header_branch
      %28 = sbr.rel (%p26) target = $region8
    $region5: #{tpu_custom_call.1} parent=1 // loop_body
      %s30 = ssub.s32 %s25, 1
      %s31 = ssub.s32 %s25, 2
      %s32 = sadd.s32 %s25, 1
      %s33 = ssub.s32 %s25, %s32
      %p34 = scmp.eq.s32.totalorder %s33, 0
      %s36 = sadd.s32 %s35, 1
      %s37 = scalar_select %p34, %s35, %s36
      %p40 = pneg %p34
      %p41 = scmp.eq.s32.totalorder %s25, 1
      %p42 = por %p40, %p41
      %p43 = scmp.ne.s32.totalorder %s35, %s38
      %p44 = scmp.eq.s32.totalorder %s25, 0
      %p45 = por %p43, %p44
      %p46 = scmp.ne.s32.totalorder %s35, %s38
      %p47 = scmp.eq.s32.totalorder %s30, 1
      %p48 = por %p46, %p47
      %p49 = scmp.ne.s32.totalorder %s38, %s39
      %p50 = scmp.eq.s32.totalorder %s30, 0
      %p51 = por %p49, %p50
      %p52 = scmp.ne.s32.totalorder %s38, %s39
      %p53 = scmp.eq.s32.totalorder %s31, 1
      %p54 = por %p52, %p53
      %p56 = scmp.ne.s32.totalorder %s39, %s55
      %p57 = scmp.eq.s32.totalorder %s31, 0
      %p58 = por %p56, %p57
      %s60 = sadd.s32 %s59, 1
      %p63 = scmp.eq.s32.totalorder %s25, 1
      %p64 = scmp.ne.s32.totalorder %s59, %s61
      %p65 = scmp.eq.s32.totalorder %s25, 0
      %p66 = por %p64, %p65
      %p67 = scmp.ne.s32.totalorder %s59, %s61
      %p68 = scmp.eq.s32.totalorder %s30, 1
      %p69 = por %p67, %p68
      %p70 = scmp.ne.s32.totalorder %s61, %s62
      %p71 = scmp.eq.s32.totalorder %s30, 0
      %p72 = por %p70, %p71
      %p73 = scmp.ne.s32.totalorder %s61, %s62
      %p74 = scmp.eq.s32.totalorder %s31, 1
      %p75 = por %p73, %p74
      %p77 = scmp.ne.s32.totalorder %s62, %s76
      %p78 = scmp.eq.s32.totalorder %s31, 0
      %p79 = por %p77, %p78
      %s81 = sadd.s32 %s80, 1
      %p84 = scmp.eq.s32.totalorder %s25, 1
      %p85 = scmp.ne.s32.totalorder %s80, %s82
      %p86 = scmp.eq.s32.totalorder %s25, 0
      %p87 = por %p85, %p86
      %p88 = scmp.ne.s32.totalorder %s80, %s82
      %p89 = scmp.eq.s32.totalorder %s30, 1
      %p90 = por %p88, %p89
      %p91 = scmp.ne.s32.totalorder %s82, %s83
      %p92 = scmp.eq.s32.totalorder %s30, 0
      %p93 = por %p91, %p92
      %p94 = scmp.ne.s32.totalorder %s82, %s83
      %p95 = scmp.eq.s32.totalorder %s31, 1
      %p96 = por %p94, %p95
      %p98 = scmp.ne.s32.totalorder %s83, %s97
      %p99 = scmp.eq.s32.totalorder %s31, 0
      %p100 = por %p98, %p99
      %s102 = sadd.s32 %s101, 1
      %p105 = scmp.eq.s32.totalorder %s25, 1
      %p106 = scmp.ne.s32.totalorder %s101, %s103
      %p107 = scmp.eq.s32.totalorder %s25, 0
      %p108 = por %p106, %p107
      %p109 = scmp.ne.s32.totalorder %s101, %s103
      %p110 = scmp.eq.s32.totalorder %s30, 1
      %p111 = por %p109, %p110
      %p112 = scmp.ne.s32.totalorder %s103, %s104
      %p113 = scmp.eq.s32.totalorder %s30, 0
      %p114 = por %p112, %p113
      %p115 = scmp.ne.s32.totalorder %s103, %s104
      %p116 = scmp.eq.s32.totalorder %s31, 1
      %p117 = por %p115, %p116
      %p119 = scmp.ne.s32.totalorder %s104, %s118
      %p120 = scmp.eq.s32.totalorder %s31, 0
      %p121 = por %p119, %p120
      %s123 = sadd.s32 %s122, 1
      %p126 = scmp.eq.s32.totalorder %s25, 1
      %p127 = scmp.ne.s32.totalorder %s122, %s124
      %p128 = scmp.eq.s32.totalorder %s25, 0
      %p129 = por %p127, %p128
      %p130 = scmp.ne.s32.totalorder %s122, %s124
      %p131 = scmp.eq.s32.totalorder %s30, 1
      %p132 = por %p130, %p131
      %p133 = scmp.ne.s32.totalorder %s124, %s125
      %p134 = scmp.eq.s32.totalorder %s30, 0
      %p135 = por %p133, %p134
      %p136 = scmp.ne.s32.totalorder %s124, %s125
      %p137 = scmp.eq.s32.totalorder %s31, 1
      %p138 = por %p136, %p137
      %p140 = scmp.ne.s32.totalorder %s125, %s139
      %p141 = scmp.eq.s32.totalorder %s31, 0
      %p142 = por %p140, %p141
      %s144 = sadd.s32 %s143, 1
      %p147 = scmp.eq.s32.totalorder %s25, 1
      %p148 = scmp.ne.s32.totalorder %s143, %s145
      %p149 = scmp.eq.s32.totalorder %s25, 0
      %p150 = por %p148, %p149
      %p151 = scmp.ne.s32.totalorder %s143, %s145
      %p152 = scmp.eq.s32.totalorder %s30, 1
      %p153 = por %p151, %p152
      %p154 = scmp.ne.s32.totalorder %s145, %s146
      %p155 = scmp.eq.s32.totalorder %s30, 0
      %p156 = por %p154, %p155
      %p157 = scmp.ne.s32.totalorder %s145, %s146
      %p158 = scmp.eq.s32.totalorder %s31, 1
      %p159 = por %p157, %p158
      %p161 = scmp.ne.s32.totalorder %s146, %s160
      %p162 = scmp.eq.s32.totalorder %s31, 0
      %p163 = por %p161, %p162
      %s164 = ssub.s32 %s25, %s32
      %p165 = scmp.eq.s32.totalorder %s164, 0
      %s167 = sadd.s32 %s166, 1
      %s168 = scalar_select %p165, %s166, %s167
      %p171 = pneg %p165
      %p172 = scmp.eq.s32.totalorder %s25, 1
      %p173 = por %p171, %p172
      %p174 = scmp.ne.s32.totalorder %s166, %s169
      %p175 = scmp.eq.s32.totalorder %s25, 0
      %p176 = por %p174, %p175
      %p177 = scmp.ne.s32.totalorder %s166, %s169
      %p178 = scmp.eq.s32.totalorder %s30, 1
      %p179 = por %p177, %p178
      %p180 = scmp.ne.s32.totalorder %s169, %s170
      %p181 = scmp.eq.s32.totalorder %s30, 0
      %p182 = por %p180, %p181
      %p183 = scmp.ne.s32.totalorder %s169, %s170
      %p184 = scmp.eq.s32.totalorder %s31, 1
      %p185 = por %p183, %p184
      %p187 = scmp.ne.s32.totalorder %s170, %s186
      %p188 = scmp.eq.s32.totalorder %s31, 0
      %p189 = por %p187, %p188
      %s190 = ssub.s32 %s25, %s32
      %p191 = scmp.eq.s32.totalorder %s190, 0
      %s193 = sadd.s32 %s192, 1
      %s194 = scalar_select %p191, %s192, %s193
      %p197 = pneg %p191
      %p198 = scmp.eq.s32.totalorder %s25, 1
      %p199 = por %p197, %p198
      %p200 = scmp.ne.s32.totalorder %s192, %s195
      %p201 = scmp.eq.s32.totalorder %s25, 0
      %p202 = por %p200, %p201
      %p203 = scmp.ne.s32.totalorder %s192, %s195
      %p204 = scmp.eq.s32.totalorder %s30, 1
      %p205 = por %p203, %p204
      %p206 = scmp.ne.s32.totalorder %s195, %s196
      %p207 = scmp.eq.s32.totalorder %s30, 0
      %p208 = por %p206, %p207
      %p209 = scmp.ne.s32.totalorder %s195, %s196
      %p210 = scmp.eq.s32.totalorder %s31, 1
      %p211 = por %p209, %p210
      %p213 = scmp.ne.s32.totalorder %s196, %s212
      %p214 = scmp.eq.s32.totalorder %s31, 0
      %p215 = por %p213, %p214
      %s216 = ssub.s32 %s25, %s32
      %p217 = scmp.eq.s32.totalorder %s216, 0
      %s219 = sadd.s32 %s218, 1
      %s220 = scalar_select %p217, %s218, %s219
      %p223 = pneg %p217
      %p224 = scmp.eq.s32.totalorder %s25, 1
      %p225 = por %p223, %p224
      %p226 = scmp.ne.s32.totalorder %s218, %s221
      %p227 = scmp.eq.s32.totalorder %s25, 0
      %p228 = por %p226, %p227
      %p229 = scmp.ne.s32.totalorder %s218, %s221
      %p230 = scmp.eq.s32.totalorder %s30, 1
      %p231 = por %p229, %p230
      %p232 = scmp.ne.s32.totalorder %s221, %s222
      %p233 = scmp.eq.s32.totalorder %s30, 0
      %p234 = por %p232, %p233
      %p235 = scmp.ne.s32.totalorder %s221, %s222
      %p236 = scmp.eq.s32.totalorder %s31, 1
      %p237 = por %p235, %p236
      %p239 = scmp.ne.s32.totalorder %s222, %s238
      %p240 = scmp.eq.s32.totalorder %s31, 0
      %p241 = por %p239, %p240
      %p242 = scmp.le.s32.totalorder 1, %s25
      %p243 = scmp.lt.s32.totalorder %s25, 3
      %p244 = pnand %p242, %p243
      %p245 = pneg %p244
      // Predicated region
      $region9: #{tpu_custom_call.1} parent=5 // pred_check
        _
      $region10: #{tpu_custom_call.1} parent=5 // pred_check_branch
        %247 = sbr.rel (%p244) target = $region12
      $region11: #{tpu_custom_call.1} parent=5 // pred_region
        %s248 = ssub.s32 %s25, 1
        // Predicated region
        $region13: #{tpu_custom_call.1} parent=11 // pred_check
          %p249 = pneg %p72
        $region14: #{tpu_custom_call.1} parent=11 // pred_check_branch
          %251 = sbr.rel (%p249) target = $region16
        $region15: #{tpu_custom_call.1} parent=11 // pred_region
          _
        $region16: #{tpu_custom_call.1} parent=11 // pred_fallthru
          _
        // Predicated region
        $region17: #{tpu_custom_call.1} parent=11 // pred_check
          %p252 = pneg %p93
        $region18: #{tpu_custom_call.1} parent=11 // pred_check_branch
          %254 = sbr.rel (%p252) target = $region20
        $region19: #{tpu_custom_call.1} parent=11 // pred_region
          _
        $region20: #{tpu_custom_call.1} parent=11 // pred_fallthru
          _
        // Predicated region
        $region21: #{tpu_custom_call.1} parent=11 // pred_check
          %p255 = pneg %p114
        $region22: #{tpu_custom_call.1} parent=11 // pred_check_branch
          %257 = sbr.rel (%p255) target = $region24
        $region23: #{tpu_custom_call.1} parent=11 // pred_region
          %s259 = ssub.s32 256, 256
          %260 = vsyncadd [#allocation7], %s259
          %s261 = sshll.u32 [#allocation6], 4
          %s262 = int_to_ptr.vmem [resolvable:$true] %s261
          %267 = dma.hbm_to_vmem [thread:$0]  %s3, 256, %s262, [#allocation7], 64, 64, 4
        $region24: #{tpu_custom_call.1} parent=11 // pred_fallthru
          _
        // Predicated region
        $region25: #{tpu_custom_call.1} parent=11 // pred_check
          %p268 = pneg %p135
        $region26: #{tpu_custom_call.1} parent=11 // pred_check_branch
          %270 = sbr.rel (%p268) target = $region28
        $region27: #{tpu_custom_call.1} parent=11 // pred_region
          %s272 = ssub.s32 256, 256
          %273 = vsyncadd [#allocation7], %s272
          %s274 = sshll.u32 [#allocation8], 4
          %s275 = int_to_ptr.vmem [resolvable:$true] %s274
          %280 = dma.hbm_to_vmem [thread:$0]  %s4, 256, %s275, [#allocation7], 64, 64, 4
        $region28: #{tpu_custom_call.1} parent=11 // pred_fallthru
          _
        // Predicated region
        $region29: #{tpu_custom_call.1} parent=11 // pred_check
          %p281 = pneg %p156
        $region30: #{tpu_custom_call.1} parent=11 // pred_check_branch
          %283 = sbr.rel (%p281) target = $region32
        $region31: #{tpu_custom_call.1} parent=11 // pred_region
          _
        $region32: #{tpu_custom_call.1} parent=11 // pred_fallthru
          _
      $region12: #{tpu_custom_call.1} parent=5 // pred_fallthru
        _
      %p284 = scmp.lt.s32.totalorder %s25, 2
      // Predicated region
      $region33: #{tpu_custom_call.1} parent=5 // pred_check
        %p285 = pneg %p284
      $region34: #{tpu_custom_call.1} parent=5 // pred_check_branch
        %287 = sbr.rel (%p285) target = $region36
      $region35: #{tpu_custom_call.1} parent=5 // pred_region
        // Predicated region
        $region37: #{tpu_custom_call.1} parent=35 // pred_check
          %p288 = pneg %p45
        $region38: #{tpu_custom_call.1} parent=35 // pred_check_branch
          %290 = sbr.rel (%p288) target = $region40
        $region39: #{tpu_custom_call.1} parent=35 // pred_region
          %s291 = sand.u32 %s35, 1
          %s292 = scalar_lea.sflag [#allocation4], %s291
          %s293 = sand.u32 %s35, 1
          %s294 = smul.addr %s293, 16
          %s295 = scalar_lea.vmem [#allocation3], %s294
          %s297 = ssub.s32 256, 256
          %298 = vsyncadd %s292, %s297
          %s299 = smul.addr %s25, 2
          %s300 = smul.addr %s299, 128
          %s301 = scalar_lea.hbm %s0, %s300
          %s302 = sshll.u32 %s295, 4
          %s303 = int_to_ptr.vmem [resolvable:$true] %s302
          %308 = dma.hbm_to_vmem [thread:$0]  %s301, 256, %s303, %s292, 128, 128, 8
        $region40: #{tpu_custom_call.1} parent=35 // pred_fallthru
          _
      $region36: #{tpu_custom_call.1} parent=5 // pred_fallthru
        _
      %p309 = scmp.le.s32.totalorder 1, %s25
      %p310 = scmp.lt.s32.totalorder %s25, 3
      %p311 = pnand %p309, %p310
      %p312 = pneg %p311
      // Predicated region
      $region41: #{tpu_custom_call.1} parent=5 // pred_check
        _
      $region42: #{tpu_custom_call.1} parent=5 // pred_check_branch
        %314 = sbr.rel (%p311) target = $region44
      $region43: #{tpu_custom_call.1} parent=5 // pred_region
        %s315 = ssub.s32 %s25, 1
        %s316 = sand.u32 %s38, 1
        %s317 = scalar_lea.sflag [#allocation4], %s316
        %s318 = sand.u32 %s38, 1
        %s319 = smul.addr %s318, 16
        %s320 = scalar_lea.vmem [#allocation3], %s319
        // Predicated region
        $region45: #{tpu_custom_call.1} parent=43 // pred_check
          %p321 = pneg %p51
        $region46: #{tpu_custom_call.1} parent=43 // pred_check_branch
          %323 = sbr.rel (%p321) target = $region48
        $region47: #{tpu_custom_call.1} parent=43 // pred_region
          %324 = dma.done %s317, 256
        $region48: #{tpu_custom_call.1} parent=43 // pred_fallthru
          _
        // Predicated region
        $region49: #{tpu_custom_call.1} parent=43 // pred_check
          %p325 = pneg %p114
        $region50: #{tpu_custom_call.1} parent=43 // pred_check_branch
          %327 = sbr.rel (%p325) target = $region52
        $region51: #{tpu_custom_call.1} parent=43 // pred_region
          %328 = dma.done [#allocation7], 256
        $region52: #{tpu_custom_call.1} parent=43 // pred_fallthru
          _
        // Predicated region
        $region53: #{tpu_custom_call.1} parent=43 // pred_check
          %p329 = pneg %p135
        $region54: #{tpu_custom_call.1} parent=43 // pred_check_branch
          %331 = sbr.rel (%p329) target = $region56
        $region55: #{tpu_custom_call.1} parent=43 // pred_region
          %332 = dma.done [#allocation7], 256
        $region56: #{tpu_custom_call.1} parent=43 // pred_fallthru
          _
        %s333 = sand.u32 %s38, 1
        %s334 = scalar_lea.sflag [#allocation4], %s333
        %s335 = sand.u32 %s38, 1
        %s336 = smul.addr %s335, 16
        %s337 = scalar_lea.vmem [#allocation3], %s336
        %p338 = pneg %p51
        %p339 = pneg %p48
        %p340 = pneg %p72
        %p341 = pneg %p69
        %p342 = pneg %p93
        %p343 = pneg %p90
        %p344 = pneg %p114
        %p345 = pneg %p111
        %p346 = pneg %p135
        %p347 = pneg %p132
        %p348 = pneg %p156
        %p349 = pneg %p153
        %p350 = pneg %p182
        %p351 = pneg %p179
        %s352 = sand.u32 %s169, 1
        %s353 = scalar_lea.sflag [#allocation5], %s352
        %s354 = sand.u32 %s169, 1
        %s355 = smul.addr %s354, 16
        %s356 = scalar_lea.vmem [#allocation9], %s355
        %p357 = pneg %p208
        %p358 = pneg %p205
        %s359 = sand.u32 %s30, 1
        %s360 = scalar_lea.sflag [#allocation11], %s359
        %s361 = sand.u32 %s195, 1
        %s362 = smul.addr %s361, 32
        %s363 = scalar_lea.vmem [#allocation10], %s362
        %p364 = pneg %p234
        %p365 = pneg %p231
        %s366 = sand.u32 %s30, 1
        %s367 = scalar_lea.sflag [#allocation11], %s366
        %s368 = sand.u32 %s221, 1
        %s369 = scalar_lea.vmem [#allocation12], %s368
        %v371 = vld [vmem:[%s320] sm:$0xff]
        %v372 = vld [vmem:[%s320 + $0x8] sm:$0xff]
        %v373 = vld [vmem:[%s1] sm:$0x1]
        %v374 = vld [vmem:[%s2] sm:$0x1]
        %vm375 = vcmask 261120
        %v376 = vsel %vm375, %v371, 0.0
        %377 = vadd.xlane.f32.xlu0 %v376
        %v378 = vpop.xlane.xlu0 %377
        %v379 = vsel %vm375, %v372, 0.0
        %380 = vadd.xlane.f32.xlu0 %v379
        %v381 = vpop.xlane.xlu0 %380
        %v382 = vrcp.pop 32.0
        %v383 = vmul.f32 %v378, %v382
        %v384 = vmul.f32 %v381, %v382
        %v385 = vsub.f32 %v371, %v383
        %v386 = vsub.f32 %v372, %v384
        %v387 = vmul.f32 %v385, %v385
        %v388 = vmul.f32 %v386, %v386
        %v389 = vsel %vm375, %v387, 0.0
        %390 = vadd.xlane.f32.xlu0 %v389
        %v391 = vpop.xlane.xlu0 %390
        %v392 = vsel %vm375, %v388, 0.0
        %393 = vadd.xlane.f32.xlu0 %v392
        %v394 = vpop.xlane.xlu0 %393
        %v395 = vmul.f32 %v391, %v382
        %v396 = vmul.f32 %v394, %v382
        %v397 = vadd.f32 %v395, 1e-05
        %v398 = vadd.f32 %v396, 1e-05
        %v399 = vrsqrt.pop %v397
        %v400 = vrsqrt.pop %v398
        %v401 = vmul.f32 %v385, %v399
        %v402 = vmul.f32 %v386, %v400
        %v404 = vlaneseq
        %v405 = vshrl.u32 %v404, 7
        %v406 = vsub.s32 0, %v405
        %v407 = vrot.slane %v373, %v406
        %v409 = vmul.f32 %v401, %v407
        %v410 = vmul.f32 %v402, %v407
        %v412 = vlaneseq
        %v413 = vshrl.u32 %v412, 7
        %v414 = vsub.s32 0, %v413
        %v415 = vrot.slane %v374, %v414
        %v417 = vadd.f32 %v409, %v415
        %v418 = vadd.f32 %v410, %v415
        %v419 = vpack.c.bf16 %v418, %v417
        %v420 = vld [vmem:[#allocation6] sm:$0xf]
        %v421 = vld [vmem:[#allocation6 + $0x4] sm:$0xf]
        %v422 = vld [vmem:[#allocation6 + $0x8] sm:$0xf]
        %v423 = vld [vmem:[#allocation6 + $0xc] sm:$0xf]
        %v428 = vunpack.c.l.b16 %v420
        %v429 = vunpack.c.l.b16 %v421
        %v430 = vunpack.c.l.b16 %v422
        %v431 = vunpack.c.l.b16 %v423
        %v432 = vpack.c.b16 %v429, %v428
        %v433 = vpack.c.b16 %v431, %v430
        %v437 = vsel %vm375, %v419, 0
        %439 = vmatprep.subr.bf16.mxu0 0
        %440 = vmatpush1.bf16.msra.mxu0 %v432
        %441 = vmatprep.subr.bf16.mxu0 0
        %442 = vmatpush1.bf16.msra.mxu0 %v433
        %443 = vmatprep.subr.bf16.mxu0 0
        %444 = vmatpush1.bf16.msra.mxu0 0
        %445 = vmatprep.subr.bf16.mxu0 0
        %446 = vmatpush1.bf16.msra.mxu0 0
        %447 = vmatprep.subr.bf16.mxu0 0
        %448 = vmatpush1.bf16.msra.mxu0 0
        %449 = vmatprep.subr.bf16.mxu0 0
        %450 = vmatpush1.bf16.msra.mxu0 0
        %451 = vmatprep.subr.bf16.mxu0 0
        %452 = vmatpush1.bf16.msra.mxu0 0
        %453 = vmatprep.subr.bf16.mxu0 0
        %454 = vmatpush1.bf16.msra.mxu0 0
        %455 = vmatprep.subr.bf16.mxu0 0
        %456 = vmatpush1.bf16.msra.mxu0 0
        %457 = vmatprep.subr.bf16.mxu0 0
        %458 = vmatpush1.bf16.msra.mxu0 0
        %459 = vmatprep.subr.bf16.mxu0 0
        %460 = vmatpush1.bf16.msra.mxu0 0
        %461 = vmatprep.subr.bf16.mxu0 0
        %462 = vmatpush1.bf16.msra.mxu0 0
        %463 = vmatprep.subr.bf16.mxu0 0
        %464 = vmatpush1.bf16.msra.mxu0 0
        %465 = vmatprep.subr.bf16.mxu0 0
        %466 = vmatpush1.bf16.msra.mxu0 0
        %467 = vmatprep.subr.bf16.mxu0 0
        %468 = vmatpush1.bf16.msra.mxu0 0
        %469 = vmatprep.subr.bf16.mxu0 0
        %470 = vmatpush1.bf16.msra.mxu0 0
        %471 = vmatprep.mubr.bf16.mxu0 0
        %472 = vmatmul.mubr.bf16.gmra.mrb[0].mxu0 %v437
        %v473 = vpop.f32.mrb[0].mxu0
        %v474 = vadd.f32 0.0, %v473
        %v475 = vpop.f32.mrb[0].mxu0
        %v476 = vpop.f32.mrb[0].mxu0
        %v477 = vadd.f32 0.0, %v476
        %v478 = vpop.f32.mrb[0].mxu0
        %479 = vdwg.mxu0
        %v480 = vpack.c.bf16 %v477, %v474
        %482 = vrot.lane.b32.xlu0 %v480, 96
        %v483 = vpop.permute.xlu0 %482
        %vm484 = vcmask 64512
        %v486 = vsel %vm484, %v480, 0
        %v489 = vsel %vm484, %v483, 0
        %491 = vmatprep.subr.bf16.mxu0 0
        %492 = vmatpush1.bf16.xpose.msra.mxu0 %v489
        %493 = vmatprep.subr.bf16.mxu0 0
        %494 = vmatpush1.bf16.xpose.msra.mxu0 0
        %495 = vmatprep.subr.bf16.mxu0 0
        %496 = vmatpush1.bf16.xpose.msra.mxu0 0
        %497 = vmatprep.subr.bf16.mxu0 0
        %498 = vmatpush1.bf16.xpose.msra.mxu0 0
        %499 = vmatprep.subr.bf16.mxu0 0
        %500 = vmatpush1.bf16.xpose.msra.mxu0 0
        %501 = vmatprep.subr.bf16.mxu0 0
        %502 = vmatpush1.bf16.xpose.msra.mxu0 0
        %503 = vmatprep.subr.bf16.mxu0 0
        %504 = vmatpush1.bf16.xpose.msra.mxu0 0
        %505 = vmatprep.subr.bf16.mxu0 0
        %506 = vmatpush1.bf16.xpose.msra.mxu0 0
        %507 = vmatprep.subr.bf16.mxu0 0
        %508 = vmatpush1.bf16.xpose.msra.mxu0 0
        %509 = vmatprep.subr.bf16.mxu0 0
        %510 = vmatpush1.bf16.xpose.msra.mxu0 0
        %511 = vmatprep.subr.bf16.mxu0 0
        %512 = vmatpush1.bf16.xpose.msra.mxu0 0
        %513 = vmatprep.subr.bf16.mxu0 0
        %514 = vmatpush1.bf16.xpose.msra.mxu0 0
        %515 = vmatprep.subr.bf16.mxu0 0
        %516 = vmatpush1.bf16.xpose.msra.mxu0 0
        %517 = vmatprep.subr.bf16.mxu0 0
        %518 = vmatpush1.bf16.xpose.msra.mxu0 0
        %519 = vmatprep.subr.bf16.mxu0 0
        %520 = vmatpush1.bf16.xpose.msra.mxu0 0
        %521 = vmatprep.subr.bf16.mxu0 0
        %522 = vmatpush1.bf16.xpose.msra.mxu0 0
        %523 = vmatprep.mubr.bf16.mxu0 0
        %524 = vmatmul.mubr.bf16.gmra.mrb[0].mxu0 %v486
        %v525 = vpop.f32.mrb[0].mxu0
        %v526 = vadd.f32 0.0, %v525
        %v527 = vpop.f32.mrb[0].mxu0
        %v528 = vpop.f32.mrb[0].mxu0
        %v529 = vadd.f32 0.0, %v528
        %v530 = vpop.f32.mrb[0].mxu0
        %531 = vdwg.mxu0
        %v532 = vmul.f32 %v526, 0.35355338
        %v533 = vmul.f32 %v529, 0.35355338
        %vm534 = vcmask 130048
        %v535 = vsel %vm534, %v532, -inf
        %536 = vmax.xlane.f32.xlu0 %v535
        %v537 = vpop.xlane.xlu0 %536
        %v538 = vsel %vm534, %v533, -inf
        %539 = vmax.xlane.f32.xlu0 %v538
        %v540 = vpop.xlane.xlu0 %539
        %v541 = vsub.f32 %v532, %v537
        %v542 = vsub.f32 %v533, %v540
        %v543 = vmul.f32 %v541, 1.442695
        %v544 = vpow.pop %v543
        %v545 = vmul.f32 %v542, 1.442695
        %v546 = vpow.pop %v545
        %v547 = vsel %vm534, %v544, 0.0
        %548 = vadd.xlane.f32.xlu0 %v547
        %v549 = vpop.xlane.xlu0 %548
        %v550 = vsel %vm534, %v546, 0.0
        %551 = vadd.xlane.f32.xlu0 %v550
        %v552 = vpop.xlane.xlu0 %551
        %v553 = vrcp.pop %v549
        %v554 = vrcp.pop %v552
        %v555 = vmul.f32 %v544, %v553
        %v556 = vmul.f32 %v546, %v554
        %v557 = vpack.c.bf16 %v556, %v555
        %v559 = vunpack.c.l.b16 %v557
        %v560 = vunpack.c.h.b16 %v557
        %v561 = vpack.c.b16 %v559, %v559
        %v562 = vpack.c.b16 %v560, %v560
        %vm565 = vcmask 125952
        %566 = vst.msk [vmem:[%s363] sm:$0xf] %vm565, %v561
        %567 = vst.msk [vmem:[%s363 + $0x4] sm:$0xf] %vm565, %v562
        %vm568 = vcmask 125984
        %v569 = vsel %vm568, %v555, 0.0
        %v570 = vrot.slane %v569, 4
        %v571 = vadd.f32 %v569, %v570
        %v572 = vrot.slane %v571, 2
        %v573 = vadd.f32 %v571, %v572
        %v574 = vrot.slane %v573, 1
        %v575 = vadd.f32 %v573, %v574
        %v576 = vadd.f32 %v575, 0.0
        %577 = vrot.lane.b32.xlu0 %v480, 64
        %v578 = vpop.permute.xlu0 %577
        %v581 = vsel %vm534, %v557, 0
        %583 = vmatprep.subr.bf16.mxu0 0
        %584 = vmatpush1.bf16.msra.mxu0 %v578
        %585 = vmatprep.subr.bf16.mxu0 0
        %586 = vmatpush1.bf16.msra.mxu0 0
        %587 = vmatprep.subr.bf16.mxu0 0
        %588 = vmatpush1.bf16.msra.mxu0 0
        %589 = vmatprep.subr.bf16.mxu0 0
        %590 = vmatpush1.bf16.msra.mxu0 0
        %591 = vmatprep.subr.bf16.mxu0 0
        %592 = vmatpush1.bf16.msra.mxu0 0
        %593 = vmatprep.subr.bf16.mxu0 0
        %594 = vmatpush1.bf16.msra.mxu0 0
        %595 = vmatprep.subr.bf16.mxu0 0
        %596 = vmatpush1.bf16.msra.mxu0 0
        %597 = vmatprep.subr.bf16.mxu0 0
        %598 = vmatpush1.bf16.msra.mxu0 0
        %599 = vmatprep.subr.bf16.mxu0 0
        %600 = vmatpush1.bf16.msra.mxu0 0
        %601 = vmatprep.subr.bf16.mxu0 0
        %602 = vmatpush1.bf16.msra.mxu0 0
        %603 = vmatprep.subr.bf16.mxu0 0
        %604 = vmatpush1.bf16.msra.mxu0 0
        %605 = vmatprep.subr.bf16.mxu0 0
        %606 = vmatpush1.bf16.msra.mxu0 0
        %607 = vmatprep.subr.bf16.mxu0 0
        %608 = vmatpush1.bf16.msra.mxu0 0
        %609 = vmatprep.subr.bf16.mxu0 0
        %610 = vmatpush1.bf16.msra.mxu0 0
        %611 = vmatprep.subr.bf16.mxu0 0
        %612 = vmatpush1.bf16.msra.mxu0 0
        %613 = vmatprep.subr.bf16.mxu0 0
        %614 = vmatpush1.bf16.msra.mxu0 0
        %615 = vmatprep.mubr.bf16.mxu0 0
        %616 = vmatmul.mubr.bf16.gmra.mrb[0].mxu0 %v581
        %v617 = vpop.f32.mrb[0].mxu0
        %v618 = vadd.f32 0.0, %v617
        %v619 = vpop.f32.mrb[0].mxu0
        %v620 = vpop.f32.mrb[0].mxu0
        %v621 = vadd.f32 0.0, %v620
        %v622 = vpop.f32.mrb[0].mxu0
        %623 = vdwg.mxu0
        %v624 = vpack.c.bf16 %v621, %v618
        %625 = vst.msk [vmem:[#allocation2] sm:$0xff] %vm484, %v624
        %626 = vrot.lane.b32.xlu0 %v480, 120
        %v627 = vpop.permute.xlu0 %626
        %628 = vrot.lane.b32.xlu0 %v480, 88
        %v629 = vpop.permute.xlu0 %628
        %v631 = vsel %vm484, %v627, 0
        %v634 = vsel %vm484, %v629, 0
        %636 = vmatprep.subr.bf16.mxu0 0
        %637 = vmatpush1.bf16.xpose.msra.mxu0 %v634
        %638 = vmatprep.subr.bf16.mxu0 0
        %639 = vmatpush1.bf16.xpose.msra.mxu0 0
        %640 = vmatprep.subr.bf16.mxu0 0
        %641 = vmatpush1.bf16.xpose.msra.mxu0 0
        %642 = vmatprep.subr.bf16.mxu0 0
        %643 = vmatpush1.bf16.xpose.msra.mxu0 0
        %644 = vmatprep.subr.bf16.mxu0 0
        %645 = vmatpush1.bf16.xpose.msra.mxu0 0
        %646 = vmatprep.subr.bf16.mxu0 0
        %647 = vmatpush1.bf16.xpose.msra.mxu0 0
        %648 = vmatprep.subr.bf16.mxu0 0
        %649 = vmatpush1.bf16.xpose.msra.mxu0 0
        %650 = vmatprep.subr.bf16.mxu0 0
        %651 = vmatpush1.bf16.xpose.msra.mxu0 0
        %652 = vmatprep.subr.bf16.mxu0 0
        %653 = vmatpush1.bf16.xpose.msra.mxu0 0
        %654 = vmatprep.subr.bf16.mxu0 0
        %655 = vmatpush1.bf16.xpose.msra.mxu0 0
        %656 = vmatprep.subr.bf16.mxu0 0
        %657 = vmatpush1.bf16.xpose.msra.mxu0 0
        %658 = vmatprep.subr.bf16.mxu0 0
        %659 = vmatpush1.bf16.xpose.msra.mxu0 0
        %660 = vmatprep.subr.bf16.mxu0 0
        %661 = vmatpush1.bf16.xpose.msra.mxu0 0
        %662 = vmatprep.subr.bf16.mxu0 0
        %663 = vmatpush1.bf16.xpose.msra.mxu0 0
        %664 = vmatprep.subr.bf16.mxu0 0
        %665 = vmatpush1.bf16.xpose.msra.mxu0 0
        %666 = vmatprep.subr.bf16.mxu0 0
        %667 = vmatpush1.bf16.xpose.msra.mxu0 0
        %668 = vmatprep.mubr.bf16.mxu0 0
        %669 = vmatmul.mubr.bf16.gmra.mrb[0].mxu0 %v631
        %v670 = vpop.f32.mrb[0].mxu0
        %v671 = vadd.f32 0.0, %v670
        %v672 = vpop.f32.mrb[0].mxu0
        %v673 = vpop.f32.mrb[0].mxu0
        %v674 = vadd.f32 0.0, %v673
        %v675 = vpop.f32.mrb[0].mxu0
        %676 = vdwg.mxu0
        %v677 = vmul.f32 %v671, 0.35355338
        %v678 = vmul.f32 %v674, 0.35355338
        %v679 = vsel %vm534, %v677, -inf
        %680 = vmax.xlane.f32.xlu0 %v679
        %v681 = vpop.xlane.xlu0 %680
        %v682 = vsel %vm534, %v678, -inf
        %683 = vmax.xlane.f32.xlu0 %v682
        %v684 = vpop.xlane.xlu0 %683
        %v685 = vsub.f32 %v677, %v681
        %v686 = vsub.f32 %v678, %v684
        %v687 = vmul.f32 %v685, 1.442695
        %v688 = vpow.pop %v687
        %v689 = vmul.f32 %v686, 1.442695
        %v690 = vpow.pop %v689
        %v691 = vsel %vm534, %v688, 0.0
        %692 = vadd.xlane.f32.xlu0 %v691
        %v693 = vpop.xlane.xlu0 %692
        %v694 = vsel %vm534, %v690, 0.0
        %695 = vadd.xlane.f32.xlu0 %v694
        %v696 = vpop.xlane.xlu0 %695
        %v697 = vrcp.pop %v693
        %v698 = vrcp.pop %v696
        %v699 = vmul.f32 %v688, %v697
        %v700 = vmul.f32 %v690, %v698
        %v701 = vpack.c.bf16 %v700, %v699
        %v703 = vunpack.c.l.b16 %v701
        %v704 = vunpack.c.h.b16 %v701
        %v705 = vpack.c.b16 %v703, %v703
        %v706 = vpack.c.b16 %v704, %v704
        %s709 = scalar_lea.vmem %s363, 8 [#allocation10]
        %710 = vst.msk [vmem:[%s709] sm:$0xf] %vm565, %v705
        %711 = vst.msk [vmem:[%s709 + $0x4] sm:$0xf] %vm565, %v706
        %v712 = vsel %vm568, %v699, 0.0
        %v713 = vrot.slane %v712, 4
        %v714 = vadd.f32 %v712, %v713
        %v715 = vrot.slane %v714, 2
        %v716 = vadd.f32 %v714, %v715
        %v717 = vrot.slane %v716, 1
        %v718 = vadd.f32 %v716, %v717
        %v719 = vadd.f32 %v576, %v718
        %720 = vrot.lane.b32.xlu0 %v480, 56
        %v721 = vpop.permute.xlu0 %720
        %v724 = vsel %vm534, %v701, 0
        %726 = vmatprep.subr.bf16.mxu0 0
        %727 = vmatpush1.bf16.msra.mxu0 %v721
        %728 = vmatprep.subr.bf16.mxu0 0
        %729 = vmatpush1.bf16.msra.mxu0 0
        %730 = vmatprep.subr.bf16.mxu0 0
        %731 = vmatpush1.bf16.msra.mxu0 0
        %732 = vmatprep.subr.bf16.mxu0 0
        %733 = vmatpush1.bf16.msra.mxu0 0
        %734 = vmatprep.subr.bf16.mxu0 0
        %735 = vmatpush1.bf16.msra.mxu0 0
        %736 = vmatprep.subr.bf16.mxu0 0
        %737 = vmatpush1.bf16.msra.mxu0 0
        %738 = vmatprep.subr.bf16.mxu0 0
        %739 = vmatpush1.bf16.msra.mxu0 0
        %740 = vmatprep.subr.bf16.mxu0 0
        %741 = vmatpush1.bf16.msra.mxu0 0
        %742 = vmatprep.subr.bf16.mxu0 0
        %743 = vmatpush1.bf16.msra.mxu0 0
        %744 = vmatprep.subr.bf16.mxu0 0
        %745 = vmatpush1.bf16.msra.mxu0 0
        %746 = vmatprep.subr.bf16.mxu0 0
        %747 = vmatpush1.bf16.msra.mxu0 0
        %748 = vmatprep.subr.bf16.mxu0 0
        %749 = vmatpush1.bf16.msra.mxu0 0
        %750 = vmatprep.subr.bf16.mxu0 0
        %751 = vmatpush1.bf16.msra.mxu0 0
        %752 = vmatprep.subr.bf16.mxu0 0
        %753 = vmatpush1.bf16.msra.mxu0 0
        %754 = vmatprep.subr.bf16.mxu0 0
        %755 = vmatpush1.bf16.msra.mxu0 0
        %756 = vmatprep.subr.bf16.mxu0 0
        %757 = vmatpush1.bf16.msra.mxu0 0
        %758 = vmatprep.mubr.bf16.mxu0 0
        %759 = vmatmul.mubr.bf16.gmra.mrb[0].mxu0 %v724
        %v760 = vpop.f32.mrb[0].mxu0
        %v761 = vadd.f32 0.0, %v760
        %v762 = vpop.f32.mrb[0].mxu0
        %v763 = vpop.f32.mrb[0].mxu0
        %v764 = vadd.f32 0.0, %v763
        %v765 = vpop.f32.mrb[0].mxu0
        %766 = vdwg.mxu0
        %v767 = vpack.c.bf16 %v764, %v761
        %769 = vrot.lane.b32.xlu0 %v767, 8
        %v770 = vpop.permute.xlu0 %769
        %vm772 = vcmask 130112
        %773 = vst.msk [vmem:[#allocation2] sm:$0xff] %vm772, %v770
        %774 = vrot.lane.b32.xlu0 %v480, 112
        %v775 = vpop.permute.xlu0 %774
        %776 = vrot.lane.b32.xlu0 %v480, 80
        %v777 = vpop.permute.xlu0 %776
        %v779 = vsel %vm484, %v775, 0
        %v782 = vsel %vm484, %v777, 0
        %784 = vmatprep.subr.bf16.mxu0 0
        %785 = vmatpush1.bf16.xpose.msra.mxu0 %v782
        %786 = vmatprep.subr.bf16.mxu0 0
        %787 = vmatpush1.bf16.xpose.msra.mxu0 0
        %788 = vmatprep.subr.bf16.mxu0 0
        %789 = vmatpush1.bf16.xpose.msra.mxu0 0
        %790 = vmatprep.subr.bf16.mxu0 0
        %791 = vmatpush1.bf16.xpose.msra.mxu0 0
        %792 = vmatprep.subr.bf16.mxu0 0
        %793 = vmatpush1.bf16.xpose.msra.mxu0 0
        %794 = vmatprep.subr.bf16.mxu0 0
        %795 = vmatpush1.bf16.xpose.msra.mxu0 0
        %796 = vmatprep.subr.bf16.mxu0 0
        %797 = vmatpush1.bf16.xpose.msra.mxu0 0
        %798 = vmatprep.subr.bf16.mxu0 0
        %799 = vmatpush1.bf16.xpose.msra.mxu0 0
        %800 = vmatprep.subr.bf16.mxu0 0
        %801 = vmatpush1.bf16.xpose.msra.mxu0 0
        %802 = vmatprep.subr.bf16.mxu0 0
        %803 = vmatpush1.bf16.xpose.msra.mxu0 0
        %804 = vmatprep.subr.bf16.mxu0 0
        %805 = vmatpush1.bf16.xpose.msra.mxu0 0
        %806 = vmatprep.subr.bf16.mxu0 0
        %807 = vmatpush1.bf16.xpose.msra.mxu0 0
        %808 = vmatprep.subr.bf16.mxu0 0
        %809 = vmatpush1.bf16.xpose.msra.mxu0 0
        %810 = vmatprep.subr.bf16.mxu0 0
        %811 = vmatpush1.bf16.xpose.msra.mxu0 0
        %812 = vmatprep.subr.bf16.mxu0 0
        %813 = vmatpush1.bf16.xpose.msra.mxu0 0
        %814 = vmatprep.subr.bf16.mxu0 0
        %815 = vmatpush1.bf16.xpose.msra.mxu0 0
        %816 = vmatprep.mubr.bf16.mxu0 0
        %817 = vmatmul.mubr.bf16.gmra.mrb[0].mxu0 %v779
        %v818 = vpop.f32.mrb[0].mxu0
        %v819 = vadd.f32 0.0, %v818
        %v820 = vpop.f32.mrb[0].mxu0
        %v821 = vpop.f32.mrb[0].mxu0
        %v822 = vadd.f32 0.0, %v821
        %v823 = vpop.f32.mrb[0].mxu0
        %824 = vdwg.mxu0
        %v825 = vmul.f32 %v819, 0.35355338
        %v826 = vmul.f32 %v822, 0.35355338
        %v827 = vsel %vm534, %v825, -inf
        %828 = vmax.xlane.f32.xlu0 %v827
        %v829 = vpop.xlane.xlu0 %828
        %v830 = vsel %vm534, %v826, -inf
        %831 = vmax.xlane.f32.xlu0 %v830
        %v832 = vpop.xlane.xlu0 %831
        %v833 = vsub.f32 %v825, %v829
        %v834 = vsub.f32 %v826, %v832
        %v835 = vmul.f32 %v833, 1.442695
        %v836 = vpow.pop %v835
        %v837 = vmul.f32 %v834, 1.442695
        %v838 = vpow.pop %v837
        %v839 = vsel %vm534, %v836, 0.0
        %840 = vadd.xlane.f32.xlu0 %v839
        %v841 = vpop.xlane.xlu0 %840
        %v842 = vsel %vm534, %v838, 0.0
        %843 = vadd.xlane.f32.xlu0 %v842
        %v844 = vpop.xlane.xlu0 %843
        %v845 = vrcp.pop %v841
        %v846 = vrcp.pop %v844
        %v847 = vmul.f32 %v836, %v845
        %v848 = vmul.f32 %v838, %v846
        %v849 = vpack.c.bf16 %v848, %v847
        %v851 = vunpack.c.l.b16 %v849
        %v852 = vunpack.c.h.b16 %v849
        %v853 = vpack.c.b16 %v851, %v851
        %v854 = vpack.c.b16 %v852, %v852
        %s857 = scalar_lea.vmem %s363, 16 [#allocation10]
        %858 = vst.msk [vmem:[%s857] sm:$0xf] %vm565, %v853
        %859 = vst.msk [vmem:[%s857 + $0x4] sm:$0xf] %vm565, %v854
        %v860 = vsel %vm568, %v847, 0.0
        %v861 = vrot.slane %v860, 4
        %v862 = vadd.f32 %v860, %v861
        %v863 = vrot.slane %v862, 2
        %v864 = vadd.f32 %v862, %v863
        %v865 = vrot.slane %v864, 1
        %v866 = vadd.f32 %v864, %v865
        %v867 = vadd.f32 %v719, %v866
        %868 = vrot.lane.b32.xlu0 %v480, 48
        %v869 = vpop.permute.xlu0 %868
        %v872 = vsel %vm534, %v849, 0
        %874 = vmatprep.subr.bf16.mxu0 0
        %875 = vmatpush1.bf16.msra.mxu0 %v869
        %876 = vmatprep.subr.bf16.mxu0 0
        %877 = vmatpush1.bf16.msra.mxu0 0
        %878 = vmatprep.subr.bf16.mxu0 0
        %879 = vmatpush1.bf16.msra.mxu0 0
        %880 = vmatprep.subr.bf16.mxu0 0
        %881 = vmatpush1.bf16.msra.mxu0 0
        %882 = vmatprep.subr.bf16.mxu0 0
        %883 = vmatpush1.bf16.msra.mxu0 0
        %884 = vmatprep.subr.bf16.mxu0 0
        %885 = vmatpush1.bf16.msra.mxu0 0
        %886 = vmatprep.subr.bf16.mxu0 0
        %887 = vmatpush1.bf16.msra.mxu0 0
        %888 = vmatprep.subr.bf16.mxu0 0
        %889 = vmatpush1.bf16.msra.mxu0 0
        %890 = vmatprep.subr.bf16.mxu0 0
        %891 = vmatpush1.bf16.msra.mxu0 0
        %892 = vmatprep.subr.bf16.mxu0 0
        %893 = vmatpush1.bf16.msra.mxu0 0
        %894 = vmatprep.subr.bf16.mxu0 0
        %895 = vmatpush1.bf16.msra.mxu0 0
        %896 = vmatprep.subr.bf16.mxu0 0
        %897 = vmatpush1.bf16.msra.mxu0 0
        %898 = vmatprep.subr.bf16.mxu0 0
        %899 = vmatpush1.bf16.msra.mxu0 0
        %900 = vmatprep.subr.bf16.mxu0 0
        %901 = vmatpush1.bf16.msra.mxu0 0
        %902 = vmatprep.subr.bf16.mxu0 0
        %903 = vmatpush1.bf16.msra.mxu0 0
        %904 = vmatprep.subr.bf16.mxu0 0
        %905 = vmatpush1.bf16.msra.mxu0 0
        %906 = vmatprep.mubr.bf16.mxu0 0
        %907 = vmatmul.mubr.bf16.gmra.mrb[0].mxu0 %v872
        %v908 = vpop.f32.mrb[0].mxu0
        %v909 = vadd.f32 0.0, %v908
        %v910 = vpop.f32.mrb[0].mxu0
        %v911 = vpop.f32.mrb[0].mxu0
        %v912 = vadd.f32 0.0, %v911
        %v913 = vpop.f32.mrb[0].mxu0
        %914 = vdwg.mxu0
        %v915 = vpack.c.bf16 %v912, %v909
        %917 = vrot.lane.b32.xlu0 %v915, 16
        %v918 = vpop.permute.xlu0 %917
        %vm920 = vcmask 195712
        %921 = vst.msk [vmem:[#allocation2] sm:$0xff] %vm920, %v918
        %922 = vrot.lane.b32.xlu0 %v480, 104
        %v923 = vpop.permute.xlu0 %922
        %924 = vrot.lane.b32.xlu0 %v480, 72
        %v925 = vpop.permute.xlu0 %924
        %v927 = vsel %vm484, %v923, 0
        %v930 = vsel %vm484, %v925, 0
        %932 = vmatprep.subr.bf16.mxu0 0
        %933 = vmatpush1.bf16.xpose.msra.mxu0 %v930
        %934 = vmatprep.subr.bf16.mxu0 0
        %935 = vmatpush1.bf16.xpose.msra.mxu0 0
        %936 = vmatprep.subr.bf16.mxu0 0
        %937 = vmatpush1.bf16.xpose.msra.mxu0 0
        %938 = vmatprep.subr.bf16.mxu0 0
        %939 = vmatpush1.bf16.xpose.msra.mxu0 0
        %940 = vmatprep.subr.bf16.mxu0 0
        %941 = vmatpush1.bf16.xpose.msra.mxu0 0
        %942 = vmatprep.subr.bf16.mxu0 0
        %943 = vmatpush1.bf16.xpose.msra.mxu0 0
        %944 = vmatprep.subr.bf16.mxu0 0
        %945 = vmatpush1.bf16.xpose.msra.mxu0 0
        %946 = vmatprep.subr.bf16.mxu0 0
        %947 = vmatpush1.bf16.xpose.msra.mxu0 0
        %948 = vmatprep.subr.bf16.mxu0 0
        %949 = vmatpush1.bf16.xpose.msra.mxu0 0
        %950 = vmatprep.subr.bf16.mxu0 0
        %951 = vmatpush1.bf16.xpose.msra.mxu0 0
        %952 = vmatprep.subr.bf16.mxu0 0
        %953 = vmatpush1.bf16.xpose.msra.mxu0 0
        %954 = vmatprep.subr.bf16.mxu0 0
        %955 = vmatpush1.bf16.xpose.msra.mxu0 0
        %956 = vmatprep.subr.bf16.mxu0 0
        %957 = vmatpush1.bf16.xpose.msra.mxu0 0
        %958 = vmatprep.subr.bf16.mxu0 0
        %959 = vmatpush1.bf16.xpose.msra.mxu0 0
        %960 = vmatprep.subr.bf16.mxu0 0
        %961 = vmatpush1.bf16.xpose.msra.mxu0 0
        %962 = vmatprep.subr.bf16.mxu0 0
        %963 = vmatpush1.bf16.xpose.msra.mxu0 0
        %964 = vmatprep.mubr.bf16.mxu0 0
        %965 = vmatmul.mubr.bf16.gmra.mrb[0].mxu0 %v927
        %v966 = vpop.f32.mrb[0].mxu0
        %v967 = vadd.f32 0.0, %v966
        %v968 = vpop.f32.mrb[0].mxu0
        %v969 = vpop.f32.mrb[0].mxu0
        %v970 = vadd.f32 0.0, %v969
        %v971 = vpop.f32.mrb[0].mxu0
        %972 = vdwg.mxu0
        %v973 = vmul.f32 %v967, 0.35355338
        %v974 = vmul.f32 %v970, 0.35355338
        %v975 = vsel %vm534, %v973, -inf
        %976 = vmax.xlane.f32.xlu0 %v975
        %v977 = vpop.xlane.xlu0 %976
        %v978 = vsel %vm534, %v974, -inf
        %979 = vmax.xlane.f32.xlu0 %v978
        %v980 = vpop.xlane.xlu0 %979
        %v981 = vsub.f32 %v973, %v977
        %v982 = vsub.f32 %v974, %v980
        %v983 = vmul.f32 %v981, 1.442695
        %v984 = vpow.pop %v983
        %v985 = vmul.f32 %v982, 1.442695
        %v986 = vpow.pop %v985
        %v987 = vsel %vm534, %v984, 0.0
        %988 = vadd.xlane.f32.xlu0 %v987
        %v989 = vpop.xlane.xlu0 %988
        %v990 = vsel %vm534, %v986, 0.0
        %991 = vadd.xlane.f32.xlu0 %v990
        %v992 = vpop.xlane.xlu0 %991
        %v993 = vrcp.pop %v989
        %v994 = vrcp.pop %v992
        %v995 = vmul.f32 %v984, %v993
        %v996 = vmul.f32 %v986, %v994
        %v997 = vpack.c.bf16 %v996, %v995
        %v999 = vunpack.c.l.b16 %v997
        %v1000 = vunpack.c.h.b16 %v997
        %v1001 = vpack.c.b16 %v999, %v999
        %v1002 = vpack.c.b16 %v1000, %v1000
        %s1005 = scalar_lea.vmem %s363, 24 [#allocation10]
        %1006 = vst.msk [vmem:[%s1005] sm:$0xf] %vm565, %v1001
        %1007 = vst.msk [vmem:[%s1005 + $0x4] sm:$0xf] %vm565, %v1002
        %v1008 = vsel %vm568, %v995, 0.0
        %v1009 = vrot.slane %v1008, 4
        %v1010 = vadd.f32 %v1008, %v1009
        %v1011 = vrot.slane %v1010, 2
        %v1012 = vadd.f32 %v1010, %v1011
        %v1013 = vrot.slane %v1012, 1
        %v1014 = vadd.f32 %v1012, %v1013
        %v1015 = vadd.f32 %v867, %v1014
        %1016 = vrot.lane.b32.xlu0 %v480, 40
        %v1017 = vpop.permute.xlu0 %1016
        %v1020 = vsel %vm534, %v997, 0
        %1022 = vmatprep.subr.bf16.mxu0 0
        %1023 = vmatpush1.bf16.msra.mxu0 %v1017
        %1024 = vmatprep.subr.bf16.mxu0 0
        %1025 = vmatpush1.bf16.msra.mxu0 0
        %1026 = vmatprep.subr.bf16.mxu0 0
        %1027 = vmatpush1.bf16.msra.mxu0 0
        %1028 = vmatprep.subr.bf16.mxu0 0
        %1029 = vmatpush1.bf16.msra.mxu0 0
        %1030 = vmatprep.subr.bf16.mxu0 0
        %1031 = vmatpush1.bf16.msra.mxu0 0
        %1032 = vmatprep.subr.bf16.mxu0 0
        %1033 = vmatpush1.bf16.msra.mxu0 0
        %1034 = vmatprep.subr.bf16.mxu0 0
        %1035 = vmatpush1.bf16.msra.mxu0 0
        %1036 = vmatprep.subr.bf16.mxu0 0
        %1037 = vmatpush1.bf16.msra.mxu0 0
        %1038 = vmatprep.subr.bf16.mxu0 0
        %1039 = vmatpush1.bf16.msra.mxu0 0
        %1040 = vmatprep.subr.bf16.mxu0 0
        %1041 = vmatpush1.bf16.msra.mxu0 0
        %1042 = vmatprep.subr.bf16.mxu0 0
        %1043 = vmatpush1.bf16.msra.mxu0 0
        %1044 = vmatprep.subr.bf16.mxu0 0
        %1045 = vmatpush1.bf16.msra.mxu0 0
        %1046 = vmatprep.subr.bf16.mxu0 0
        %1047 = vmatpush1.bf16.msra.mxu0 0
        %1048 = vmatprep.subr.bf16.mxu0 0
        %1049 = vmatpush1.bf16.msra.mxu0 0
        %1050 = vmatprep.subr.bf16.mxu0 0
        %1051 = vmatpush1.bf16.msra.mxu0 0
        %1052 = vmatprep.subr.bf16.mxu0 0
        %1053 = vmatpush1.bf16.msra.mxu0 0
        %1054 = vmatprep.mubr.bf16.mxu0 0
        %1055 = vmatmul.mubr.bf16.gmra.mrb[0].mxu0 %v1020
        %v1056 = vpop.f32.mrb[0].mxu0
        %v1057 = vadd.f32 0.0, %v1056
        %v1058 = vpop.f32.mrb[0].mxu0
        %v1059 = vpop.f32.mrb[0].mxu0
        %v1060 = vadd.f32 0.0, %v1059
        %v1061 = vpop.f32.mrb[0].mxu0
        %1062 = vdwg.mxu0
        %v1063 = vpack.c.bf16 %v1060, %v1057
        %1065 = vrot.lane.b32.xlu0 %v1063, 24
        %v1066 = vpop.permute.xlu0 %1065
        %vm1068 = vcmask 261312
        %1069 = vst.msk [vmem:[#allocation2] sm:$0xff] %vm1068, %v1066
        %v1070 = vmul.f32 %v1015, 0.0625
        %1072 = vrot.lane.b32.xlu0 %v1070, 124
        %v1073 = vpop.permute.xlu0 %1072
        %vm1075 = vcmask 90112
        %1076 = vst.msk [vmem:[%s369] sm:$0x1] %vm1075, %v1073
        %v1077 = vld [vmem:[#allocation2] sm:$0xff]
        %v1078 = vld [vmem:[#allocation8] sm:$0xf]
        %v1079 = vld [vmem:[#allocation8 + $0x4] sm:$0xf]
        %v1080 = vld [vmem:[#allocation8 + $0x8] sm:$0xf]
        %v1081 = vld [vmem:[#allocation8 + $0xc] sm:$0xf]
        %v1082 = vld [vmem:[%s5] sm:$0x1]
        %v1084 = vlaneseq
        %v1085 = vshrl.u32 %v1084, 7
        %v1086 = vsub.s32 0, %v1085
        %v1087 = vrot.slane %v1082, %v1086
        %v1093 = vunpack.c.l.b16 %v1078
        %v1094 = vunpack.c.l.b16 %v1079
        %v1095 = vunpack.c.l.b16 %v1080
        %v1096 = vunpack.c.l.b16 %v1081
        %v1097 = vpack.c.b16 %v1094, %v1093
        %v1098 = vpack.c.b16 %v1096, %v1095
        %v1102 = vsel %vm375, %v1077, 0
        %1104 = vmatprep.subr.bf16.mxu0 0
        %1105 = vmatpush1.bf16.msra.mxu0 %v1097
        %1106 = vmatprep.subr.bf16.mxu0 0
        %1107 = vmatpush1.bf16.msra.mxu0 %v1098
        %1108 = vmatprep.subr.bf16.mxu0 0
        %1109 = vmatpush1.bf16.msra.mxu0 0
        %1110 = vmatprep.subr.bf16.mxu0 0
        %1111 = vmatpush1.bf16.msra.mxu0 0
        %1112 = vmatprep.subr.bf16.mxu0 0
        %1113 = vmatpush1.bf16.msra.mxu0 0
        %1114 = vmatprep.subr.bf16.mxu0 0
        %1115 = vmatpush1.bf16.msra.mxu0 0
        %1116 = vmatprep.subr.bf16.mxu0 0
        %1117 = vmatpush1.bf16.msra.mxu0 0
        %1118 = vmatprep.subr.bf16.mxu0 0
        %1119 = vmatpush1.bf16.msra.mxu0 0
        %1120 = vmatprep.subr.bf16.mxu0 0
        %1121 = vmatpush1.bf16.msra.mxu0 0
        %1122 = vmatprep.subr.bf16.mxu0 0
        %1123 = vmatpush1.bf16.msra.mxu0 0
        %1124 = vmatprep.subr.bf16.mxu0 0
        %1125 = vmatpush1.bf16.msra.mxu0 0
        %1126 = vmatprep.subr.bf16.mxu0 0
        %1127 = vmatpush1.bf16.msra.mxu0 0
        %1128 = vmatprep.subr.bf16.mxu0 0
        %1129 = vmatpush1.bf16.msra.mxu0 0
        %1130 = vmatprep.subr.bf16.mxu0 0
        %1131 = vmatpush1.bf16.msra.mxu0 0
        %1132 = vmatprep.subr.bf16.mxu0 0
        %1133 = vmatpush1.bf16.msra.mxu0 0
        %1134 = vmatprep.subr.bf16.mxu0 0
        %1135 = vmatpush1.bf16.msra.mxu0 0
        %1136 = vmatprep.mubr.bf16.mxu0 0
        %1137 = vmatmul.mubr.bf16.gmra.mrb[0].mxu0 %v1102
        %v1138 = vpop.f32.mrb[0].mxu0
        %v1139 = vadd.f32 %v1087, %v1138
        %v1140 = vpop.f32.mrb[0].mxu0
        %v1141 = vpop.f32.mrb[0].mxu0
        %v1142 = vadd.f32 %v1087, %v1141
        %v1143 = vpop.f32.mrb[0].mxu0
        %1144 = vdwg.mxu0
        %v1145 = vadd.f32 %v371, %v1139
        %v1146 = vadd.f32 %v372, %v1142
        %1147 = vst.msk [vmem:[%s356] sm:$0xff] %vm375, %v1145
        %1148 = vst.msk [vmem:[%s356 + $0x8] sm:$0xff] %vm375, %v1146
        %s1149 = sand.u32 %s169, 1
        %s1150 = scalar_lea.sflag [#allocation5], %s1149
        %s1151 = sand.u32 %s169, 1
        %s1152 = smul.addr %s1151, 16
        %s1153 = scalar_lea.vmem [#allocation9], %s1152
        %s1154 = sand.u32 %s30, 1
        %s1155 = scalar_lea.sflag [#allocation11], %s1154
        %s1156 = sand.u32 %s195, 1
        %s1157 = smul.addr %s1156, 32
        %s1158 = scalar_lea.vmem [#allocation10], %s1157
        %s1159 = sand.u32 %s30, 1
        %s1160 = scalar_lea.sflag [#allocation11], %s1159
        %s1161 = sand.u32 %s221, 1
        %s1162 = scalar_lea.vmem [#allocation12], %s1161
        // Predicated region
        $region57: #{tpu_custom_call.1} parent=43 // pred_check
          %p1163 = pneg %p179
        $region58: #{tpu_custom_call.1} parent=43 // pred_check_branch
          %1165 = sbr.rel (%p1163) target = $region60
        $region59: #{tpu_custom_call.1} parent=43 // pred_region
          %s1167 = ssub.s32 256, 256
          %1168 = vsyncadd %s1150, %s1167
          %s1169 = smul.addr %s30, 2
          %s1170 = smul.addr %s1169, 128
          %s1171 = scalar_lea.hbm %s6, %s1170
          %s1172 = sshll.u32 %s1153, 4
          %s1173 = int_to_ptr.vmem [resolvable:$true] %s1172
          %1178 = dma.vmem_to_hbm [thread:$0]  %s1173, 256, %s1171, %s1150, 128, 128, 8
        $region60: #{tpu_custom_call.1} parent=43 // pred_fallthru
          _
        // Predicated region
        $region61: #{tpu_custom_call.1} parent=43 // pred_check
          %p1179 = pneg %p205
        $region62: #{tpu_custom_call.1} parent=43 // pred_check_branch
          %1181 = sbr.rel (%p1179) target = $region64
        $region63: #{tpu_custom_call.1} parent=43 // pred_region
          %s1183 = ssub.s32 512, 512
          %1184 = vsyncadd %s1155, %s1183
          %s1185 = smul.addr %s30, 8
          %s1186 = smul.addr %s1185, 64
          %s1187 = scalar_lea.hbm %s7, %s1186
          %s1188 = sshll.u32 %s1158, 4
          %s1189 = int_to_ptr.vmem [resolvable:$true] %s1188
          %1194 = dma.vmem_to_hbm [thread:$0]  %s1189, 512, %s1187, %s1155, 64, 64, 4
        $region64: #{tpu_custom_call.1} parent=43 // pred_fallthru
          _
        // Predicated region
        $region65: #{tpu_custom_call.1} parent=43 // pred_check
          %p1195 = pneg %p231
        $region66: #{tpu_custom_call.1} parent=43 // pred_check_branch
          %1197 = sbr.rel (%p1195) target = $region68
        $region67: #{tpu_custom_call.1} parent=43 // pred_region
          %s1199 = ssub.s32 16, 16
          %1200 = vsyncadd %s1160, %s1199
          %s1201 = smul.addr %s30, 16
          %s1202 = scalar_lea.hbm %s8, %s1201
          %s1204 = sshll.u32 %s1162, 4
          %s1205 = int_to_ptr.vmem [resolvable:$true] %s1204
          %1207 = dma.vmem_to_hbm [thread:$0]  %s1205, 16, %s1202, %s1160
        $region68: #{tpu_custom_call.1} parent=43 // pred_fallthru
          _
      $region44: #{tpu_custom_call.1} parent=5 // pred_fallthru
        _
      %p1208 = scmp.le.s32.totalorder 2, %s25
      // Predicated region
      $region69: #{tpu_custom_call.1} parent=5 // pred_check
        %p1209 = pneg %p1208
      $region70: #{tpu_custom_call.1} parent=5 // pred_check_branch
        %1211 = sbr.rel (%p1209) target = $region72
      $region71: #{tpu_custom_call.1} parent=5 // pred_region
        %s1212 = ssub.s32 %s25, 2
        // Predicated region
        $region73: #{tpu_custom_call.1} parent=71 // pred_check
          %p1213 = pneg %p185
        $region74: #{tpu_custom_call.1} parent=71 // pred_check_branch
          %1215 = sbr.rel (%p1213) target = $region76
        $region75: #{tpu_custom_call.1} parent=71 // pred_region
          %s1216 = sand.u32 %s170, 1
          %s1217 = scalar_lea.sflag [#allocation5], %s1216
          %s1218 = sand.u32 %s170, 1
          %s1219 = smul.addr %s1218, 16
          %s1220 = scalar_lea.vmem [#allocation9], %s1219
          %1221 = dma.done %s1217, 256
        $region76: #{tpu_custom_call.1} parent=71 // pred_fallthru
          _
        // Predicated region
        $region77: #{tpu_custom_call.1} parent=71 // pred_check
          %p1222 = pneg %p211
        $region78: #{tpu_custom_call.1} parent=71 // pred_check_branch
          %1224 = sbr.rel (%p1222) target = $region80
        $region79: #{tpu_custom_call.1} parent=71 // pred_region
          %s1225 = sand.u32 %s31, 1
          %s1226 = scalar_lea.sflag [#allocation11], %s1225
          %s1227 = sand.u32 %s196, 1
          %s1228 = smul.addr %s1227, 32
          %s1229 = scalar_lea.vmem [#allocation10], %s1228
          %1230 = dma.done %s1226, 512
        $region80: #{tpu_custom_call.1} parent=71 // pred_fallthru
          _
        // Predicated region
        $region81: #{tpu_custom_call.1} parent=71 // pred_check
          %p1231 = pneg %p237
        $region82: #{tpu_custom_call.1} parent=71 // pred_check_branch
          %1233 = sbr.rel (%p1231) target = $region84
        $region83: #{tpu_custom_call.1} parent=71 // pred_region
          %s1234 = sand.u32 %s31, 1
          %s1235 = scalar_lea.sflag [#allocation11], %s1234
          %s1236 = sand.u32 %s222, 1
          %s1237 = scalar_lea.vmem [#allocation12], %s1236
          %1238 = dma.done %s1235, 16
        $region84: #{tpu_custom_call.1} parent=71 // pred_fallthru
          _
      $region72: #{tpu_custom_call.1} parent=5 // pred_fallthru
        _
    $region6: #{tpu_custom_call.1} parent=1 // loop_footer
      %s29 = sadd.s32 1, %s25
    $region7: #{tpu_custom_call.1} parent=1 // loop_footer_branch
      %24 = sbr.rel target = $region3
    $region8: #{tpu_custom_call.1} parent=1 // loop_exit
      _
    %1239 = vsyncpa [#allocation4], 1
    %s1240 = scalar_lea.sflag [#allocation4], 1
    %1241 = vsyncpa %s1240, 1
    %1242 = vsyncpa [#allocation7], 1
    %1243 = vsyncpa [#allocation5], 1
    %s1244 = scalar_lea.sflag [#allocation5], 1
    %1245 = vsyncpa %s1244, 1
    %1246 = vsyncpa [#allocation11], 1
    %s1247 = scalar_lea.sflag [#allocation11], 1
    %1248 = vsyncpa %s1247, 1

</llo_original>
